<compile_context>
chip_gen: v5e
topology: v5e:2x2
jax: 0.10.0
libtpu: 0.0.40
codegen_flags: <defaults>
</compile_context>

<pallas_src>
import functools

import jax
import jax.numpy as jnp
from jax import lax
from jax.experimental import pallas as pl
from jax.experimental.pallas import tpu as pltpu


# ----------------------------------------------------------------------------
# Kernel bodies
# ----------------------------------------------------------------------------
def _accum_stats(stats_ref, y, *, n_valid, n_tile):
    """Write per-tile partial per-channel [sum; sum_sq] (padding lanes masked)."""
    if n_valid % n_tile != 0:
        t = pl.program_id(1)
        lane = lax.broadcasted_iota(jnp.int32, (1, n_tile), 1)
        valid = ((t * n_tile + lane) < n_valid).astype(jnp.float32)   # [1, Nt]
        ym = y * valid
        ysq = (y * y) * valid
    else:
        ym = y
        ysq = y * y
    s1 = jnp.sum(ym, axis=1, keepdims=True)                 # [C, 1]  (XLU reduce)
    s2 = jnp.sum(ysq, axis=1, keepdims=True)                # [C, 1]
    stats_ref[0, 0] = jnp.concatenate([s1, s2], axis=0)     # [2C, 1]


def _interp_conv_kernel(*refs, S, n_valid, n_tile, has_points1, prefold):
    """3-NN inverse-distance interpolation + first 1x1 conv + BN partial stats."""
    it = iter(refs)
    if S > 1:
        mp_ref = next(it)        # (1,) SMEM scalar: max_pos of square_distance()
        xyz1_ref = next(it)      # (1, 3, Nt)
        xyz2t_ref = next(it)     # (1, S, 3)
    p1_ref = next(it) if has_points1 else None    # (1, D1, Nt)
    if prefold:
        wp2_ref = next(it)       # (1, C0, S)   = W_interp @ points2 (per batch)
    else:
        p2_ref = next(it)        # (1, D2, S)
        w_int_ref = next(it)     # (C0, D2)
    w_p1_ref = next(it) if has_points1 else None  # (C0, D1)
    y_ref = next(it)             # (1, C0, Nt)
    stats_ref = next(it)         # (1, 1, 2*C0, 1)

    if S == 1:
        # reference: points2.repeat(1, N, 1); wrapper guarantees prefold==True here.
        y = jnp.broadcast_to(wp2_ref[0], (wp2_ref.shape[1], n_tile))     # [C0, Nt]
    else:
        # ---- square_distance (expanded form + max_pos rescale, as reference) ----
        mp = mp_ref[0]
        inv_mp = 1.0 / mp
        x1 = xyz1_ref[0] * inv_mp                               # [3, Nt]
        x2t = xyz2t_ref[0] * inv_mp                             # [S, 3]
        mm = jnp.dot(x2t, x1, preferred_element_type=jnp.float32)   # [S, Nt]
        sq1 = jnp.sum(x1 * x1, axis=0, keepdims=True)           # [1, Nt]
        sq2 = jnp.sum(x2t * x2t, axis=1, keepdims=True)         # [S, 1]
        dist = (sq2 - 2.0 * mm + sq1) * mp                      # [S, Nt]

        # ---- 3-NN selection: masked arg-min passes, inv-dist weights fused ----
        iota_s = lax.broadcasted_iota(jnp.int32, (S, n_tile), 0)
        d = dist
        wacc = jnp.zeros((S, n_tile), jnp.float32)
        norm = jnp.zeros((1, n_tile), jnp.float32)
        for _ in range(min(3, S)):
            dmin = jnp.min(d, axis=0, keepdims=True)                         # [1, Nt]
            idx = jnp.min(jnp.where(d == dmin, iota_s, S), axis=0,
                          keepdims=True)                                     # [1, Nt]
            onehot = iota_s == idx                                           # [S, Nt]
            recip = pl.reciprocal(dmin + 1e-8, approx=True)                  # [1, Nt]
            wacc = wacc + jnp.where(onehot, recip, 0.0)
            norm = norm + recip
            d = jnp.where(onehot, jnp.float32(1e30), d)
        inv_norm = pl.reciprocal(norm, approx=True)                          # [1, Nt]

        # index_points(points2, idx)*weight summed over k == points2 @ (wacc/norm);
        # normalization deferred to the (smaller) matmul output.
        if prefold:
            y = jnp.dot(wp2_ref[0], wacc,
                        preferred_element_type=jnp.float32) * inv_norm       # [C0, Nt]
        else:
            interp = jnp.dot(p2_ref[0], wacc,
                             preferred_element_type=jnp.float32) * inv_norm  # [D2, Nt]
            y = jnp.dot(w_int_ref[...], interp,
                        preferred_element_type=jnp.float32)                  # [C0, Nt]

    # ---- first 1x1 conv on the points1 (skip) part; bias cancels in batch BN ----
    if has_points1:
        y = y + jnp.dot(w_p1_ref[...], p1_ref[0],
                        preferred_element_type=jnp.float32)
    y_ref[0] = y
    _accum_stats(stats_ref, y, n_valid=n_valid, n_tile=n_tile)


def _bn_relu_conv_kernel(yprev_ref, scale_ref, shift_ref, w_ref, y_ref, stats_ref,
                         *, n_valid, n_tile):
    """Folded BN (scale/shift) + ReLU of previous layer, then next 1x1 conv + stats."""
    x = jnp.maximum(yprev_ref[0] * scale_ref[...] + shift_ref[...], 0.0)     # [Cp, Nt]
    y = jnp.dot(w_ref[...], x, preferred_element_type=jnp.float32)           # [Ci, Nt]
    y_ref[0] = y
    _accum_stats(stats_ref, y, n_valid=n_valid, n_tile=n_tile)


def _bn_relu_kernel(y_ref, scale_ref, shift_ref, out_ref):
    """Final folded BN + ReLU."""
    out_ref[0] = jnp.maximum(y_ref[0] * scale_ref[...] + shift_ref[...], 0.0)


# ----------------------------------------------------------------------------
# Wrapper
# ----------------------------------------------------------------------------
def _choose_n_tile(n, s):
    # Budget ~24 MiB for the ~8 live f32 [S, N_tile] temporaries of the 3-NN
    # selection; leaves headroom for double-buffered I/O under v7x's 64 MiB VMEM.
    budget = 24 * 1024 * 1024
    cap = max(128, (budget // (8 * 4 * max(int(s), 1)) // 128) * 128)
    if n <= min(cap, 2048):
        return int(n)                 # single tile: block == full (padded) extent
    return int(min(1024, cap))        # multiple of 128 -> (8,128)-aligned tiles


def _fold_bn(stats, gamma, beta, c, count):
    """Reduce partial [sum; sum_sq] stats and fold BN into one scale/shift FMA."""
    tot = jnp.sum(stats, axis=(0, 1))[:, 0]                  # [2c]
    mean = tot[:c] / count
    var = tot[c:] / count - mean * mean                      # biased (training-mode BN)
    scale = gamma * lax.rsqrt(var + 1e-5)
    shift = beta - mean * scale
    return (scale.reshape(c, 1).astype(jnp.float32),
            shift.reshape(c, 1).astype(jnp.float32))


def pointnet_fp_forward(xyz1, xyz2, points1, points2, layer_params):
    """xyz1:[B,3,N] xyz2:[B,3,S] points1:[B,D1,N] or None, points2:[B,D2,S]
    layer_params: list of (w[Cin,Cout], b[1,Cout], gamma[1,Cout], beta[1,Cout]).
    (Conv bias b is accepted but unused: it cancels exactly under batch-stat BN.)
    Returns [B, mlp[-1], N] like the PyTorch module."""
    f32 = jnp.float32
    B, _, N = xyz1.shape
    S = int(xyz2.shape[2])
    D2 = int(points2.shape[1])
    has_points1 = points1 is not None
    D1 = int(points1.shape[1]) if has_points1 else 0
    couts = [int(w.shape[1]) for (w, _, _, _) in layer_params]
    L = len(couts)

    n_tile = _choose_n_tile(N, S)
    T = -(-N // n_tile)
    n_pad = T * n_tile

    xyz1 = xyz1.astype(f32)
    xyz2 = xyz2.astype(f32)
    points2 = points2.astype(f32)
    if has_points1:
        points1 = points1.astype(f32)

    # max over all (unpadded) coordinates, exactly as square_distance()'s max_pos.
    mp = jnp.maximum(jnp.max(xyz1), jnp.max(xyz2)).astype(f32).reshape(1)
    xyz2_t = jnp.transpose(xyz2, (0, 2, 1))                   # [B, S, 3] (tiny, resident)

    if n_pad != N:
        pad = ((0, 0), (0, 0), (0, n_pad - N))
        xyz1 = jnp.pad(xyz1, pad)
        if has_points1:
            points1 = jnp.pad(points1, pad)

    cparams = pltpu.CompilerParams(
        dimension_semantics=("parallel", "parallel"),
        vmem_limit_bytes=48 * 1024 * 1024)
    grid = (B, T)
    count = float(B * N)

    # ---------------- stage 0: 3-NN interpolation + conv0 + BN partial stats ----------------
    c0 = couts[0]
    w0t = jnp.transpose(layer_params[0][0]).astype(f32)       # [c0, D1+D2]
    w_int = w0t[:, D1:]                                        # [c0, D2] acts on interp part
    w_p1 = w0t[:, :D1] if has_points1 else None                # [c0, D1] acts on points1
    # Pre-fold conv0 into points2 whenever it reduces in-kernel MXU work
    # (always for S == 1, where interp is just a broadcast of points2).
    prefold = (S == 1) or (c0 * S <= D2 * S + c0 * D2)

    args, in_specs = [], []
    if S > 1:
        args += [mp, xyz1, xyz2_t]
        in_specs += [
            pl.BlockSpec(memory_space=pltpu.MemorySpace.SMEM),
            pl.BlockSpec((1, 3, n_tile), lambda b, t: (b, 0, t)),
            pl.BlockSpec((1, S, 3), lambda b, t: (b, 0, 0)),
        ]
    if has_points1:
        args.append(points1)
        in_specs.append(pl.BlockSpec((1, D1, n_tile), lambda b, t: (b, 0, t)))
    if prefold:
        wp2 = jnp.einsum('cd,bds->bcs', w_int, points2)       # [B, c0, S], tiny (XLA)
        args.append(wp2)
        in_specs.append(pl.BlockSpec((1, c0, S), lambda b, t: (b, 0, 0)))
    else:
        args += [points2, w_int]
        in_specs += [pl.BlockSpec((1, D2, S), lambda b, t: (b, 0, 0)),
                     pl.BlockSpec((c0, D2), lambda b, t: (0, 0))]
    if has_points1:
        args.append(w_p1)
        in_specs.append(pl.BlockSpec((c0, D1), lambda b, t: (0, 0)))

    y, stats = pl.pallas_call(
        functools.partial(_interp_conv_kernel, S=S, n_valid=N, n_tile=n_tile,
                          has_points1=has_points1, prefold=prefold),
        grid=grid,
        in_specs=in_specs,
        out_specs=(pl.BlockSpec((1, c0, n_tile), lambda b, t: (b, 0, t)),
                   pl.BlockSpec((1, 1, 2 * c0, 1), lambda b, t: (b, t, 0, 0))),
        out_shape=(jax.ShapeDtypeStruct((B, c0, n_pad), f32),
                   jax.ShapeDtypeStruct((B, T, 2 * c0, 1), f32)),
        compiler_params=cparams,
    )(*args)

    # ---------------- intermediate layers: fold BN_{i-1} + ReLU + conv_i + stats ----------------
    for i in range(1, L):
        c_prev, c_i = couts[i - 1], couts[i]
        g = layer_params[i - 1][2].reshape(-1).astype(f32)
        be = layer_params[i - 1][3].reshape(-1).astype(f32)
        scale, shift = _fold_bn(stats, g, be, c_prev, count)
        wt = jnp.transpose(layer_params[i][0]).astype(f32)    # [c_i, c_prev]
        y, stats = pl.pallas_call(
            functools.partial(_bn_relu_conv_kernel, n_valid=N, n_tile=n_tile),
            grid=grid,
            in_specs=[pl.BlockSpec((1, c_prev, n_tile), lambda b, t: (b, 0, t)),
                      pl.BlockSpec((c_prev, 1), lambda b, t: (0, 0)),
                      pl.BlockSpec((c_prev, 1), lambda b, t: (0, 0)),
                      pl.BlockSpec((c_i, c_prev), lambda b, t: (0, 0))],
            out_specs=(pl.BlockSpec((1, c_i, n_tile), lambda b, t: (b, 0, t)),
                       pl.BlockSpec((1, 1, 2 * c_i, 1), lambda b, t: (b, t, 0, 0))),
            out_shape=(jax.ShapeDtypeStruct((B, c_i, n_pad), f32),
                       jax.ShapeDtypeStruct((B, T, 2 * c_i, 1), f32)),
            compiler_params=cparams,
        )(y, scale, shift, wt)

    # ---------------- final: fold last BN + ReLU, lane-dense [B, C_last, N] output ----------------
    c_last = couts[-1]
    g = layer_params[-1][2].reshape(-1).astype(f32)
    be = layer_params[-1][3].reshape(-1).astype(f32)
    scale, shift = _fold_bn(stats, g, be, c_last, count)
    out = pl.pallas_call(
        _bn_relu_kernel,
        grid=grid,
        in_specs=[pl.BlockSpec((1, c_last, n_tile), lambda b, t: (b, 0, t)),
                  pl.BlockSpec((c_last, 1), lambda b, t: (0, 0)),
                  pl.BlockSpec((c_last, 1), lambda b, t: (0, 0))],
        out_specs=pl.BlockSpec((1, c_last, n_tile), lambda b, t: (b, 0, t)),
        out_shape=jax.ShapeDtypeStruct((B, c_last, n_pad), f32),
        compiler_params=cparams,
    )(y, scale, shift)

    return out[:, :, :N] if n_pad != N else out


def init_params(key, in_channel, mlp):
    """Deterministic synthetic init for Conv1d(k=1) + BatchNorm1d per layer."""
    params = []
    last = in_channel
    for out in mlp:
        key, k1, k2 = jax.random.split(key, 3)
        w = jax.random.normal(k1, (last, out), jnp.float32) / jnp.sqrt(float(last))
        b = 0.01 * jax.random.normal(k2, (1, out), jnp.float32)
        gamma = jnp.ones((1, out), jnp.float32)
        beta = jnp.zeros((1, out), jnp.float32)
        params.append((w, b, gamma, beta))
        last = out
    return params


if __name__ == "__main__":
    key = jax.random.PRNGKey(0)
    B, N, S = 2, 16, 8            # N dense points, S sampled points
    D1, D2 = 6, 8                 # points1 / points2 feature channels
    mlp = (32, 16)

    k = jax.random.split(key, 5)
    xyz1 = jax.random.normal(k[0], (B, 3, N), jnp.float32)
    xyz2 = jax.random.normal(k[1], (B, 3, S), jnp.float32)
    points1 = jax.random.normal(k[2], (B, D1, N), jnp.float32)
    points2 = jax.random.normal(k[3], (B, D2, S), jnp.float32)
    params = init_params(k[4], D1 + D2, mlp)

    fwd = jax.jit(pointnet_fp_forward)
    out = fwd(xyz1, xyz2, points1, points2, params)
    jax.block_until_ready(out)
    assert out.shape == (B, mlp[-1], N), out.shape
    assert bool(jnp.all(jnp.isfinite(out)))
    print("KERNEL_OK")
</pallas_src>

<mosaic_0001>
module attributes {stable_mosaic.version = 11 : i64} {
  func.func @_interp_conv_kernel(%arg0: i32, %arg1: i32, %arg2: memref<1xf32, #tpu.memory_space<smem>>, %arg3: memref<1x3x16xf32, #tpu.memory_space<vmem>>, %arg4: memref<1x8x3xf32, #tpu.memory_space<vmem>>, %arg5: memref<1x6x16xf32, #tpu.memory_space<vmem>>, %arg6: memref<1x32x8xf32, #tpu.memory_space<vmem>>, %arg7: memref<32x6xf32, #tpu.memory_space<vmem>>, %arg8: memref<1x32x16xf32, #tpu.memory_space<vmem>>, %arg9: memref<1x1x64x1xf32, #tpu.memory_space<vmem>>) attributes {dimension_semantics = [#tpu.dimension_semantics<parallel>, #tpu.dimension_semantics<parallel>], iteration_bounds = array<i64: 2, 1>, scalar_prefetch = 0 : i64, scratch_operands = 0 : i64, tpu.core_type = #tpu.core_type<tc>, window_params = [{transform_indices = @transform_0, window_bounds = array<i64: 1>}, {transform_indices = @transform_1, window_bounds = array<i64: 1, 3, 16>}, {transform_indices = @transform_2, window_bounds = array<i64: 1, 8, 3>}, {transform_indices = @transform_3, window_bounds = array<i64: 1, 6, 16>}, {transform_indices = @transform_4, window_bounds = array<i64: 1, 32, 8>}, {pipeline_mode = #tpu.pipeline_mode<synchronous>, transform_indices = @transform_5, window_bounds = array<i64: 32, 6>}, {transform_indices = @transform_6, window_bounds = array<i64: 1, 32, 16>}, {transform_indices = @transform_7, window_bounds = array<i64: 1, 1, 64, 1>}]} {
    %c0 = arith.constant 0 : index
    %0 = memref.load %arg2[%c0] : memref<1xf32, #tpu.memory_space<smem>>
    %cst = arith.constant 1.000000e+00 : f32
    %1 = arith.divf %cst, %0 : f32
    %c0_0 = arith.constant 0 : index
    %c0_1 = arith.constant 0 : index
    %c0_2 = arith.constant 0 : index
    %2 = vector.load %arg3[%c0_0, %c0_1, %c0_2] : memref<1x3x16xf32, #tpu.memory_space<vmem>>, vector<1x3x16xf32>
    %3 = vector.shape_cast %2 : vector<1x3x16xf32> to vector<3x16xf32>
    %4 = vector.broadcast %1 : f32 to vector<3x16xf32>
    %5 = arith.mulf %3, %4 : vector<3x16xf32>
    %c0_3 = arith.constant 0 : index
    %c0_4 = arith.constant 0 : index
    %c0_5 = arith.constant 0 : index
    %6 = vector.load %arg4[%c0_3, %c0_4, %c0_5] : memref<1x8x3xf32, #tpu.memory_space<vmem>>, vector<1x8x3xf32>
    %7 = vector.shape_cast %6 : vector<1x8x3xf32> to vector<8x3xf32>
    %8 = vector.broadcast %1 : f32 to vector<8x3xf32>
    %9 = arith.mulf %7, %8 : vector<8x3xf32>
    %cst_6 = arith.constant dense<0.000000e+00> : vector<8x16xf32>
    %10 = tpu.matmul %9, %5, %cst_6 {dimension_numbers = #tpu.dot_dimension_numbers<[1], [0], [0], [1], [0, 0, 1, 1], [], []>} : vector<8x3xf32>, vector<3x16xf32>, vector<8x16xf32> -> vector<8x16xf32>
    %11 = arith.mulf %5, %5 : vector<3x16xf32>
    %cst_7 = arith.constant dense<0.000000e+00> : vector<16xf32>
    %12 = vector.multi_reduction <add>, %11, %cst_7 [0] : vector<3x16xf32> to vector<16xf32>
    %13 = vector.shape_cast %12 : vector<16xf32> to vector<1x16xf32>
    %14 = arith.mulf %9, %9 : vector<8x3xf32>
    %cst_8 = arith.constant dense<0.000000e+00> : vector<8xf32>
    %15 = vector.multi_reduction <add>, %14, %cst_8 [1] : vector<8x3xf32> to vector<8xf32>
    %16 = vector.shape_cast %15 : vector<8xf32> to vector<8x1xf32>
    %cst_9 = arith.constant 2.000000e+00 : f32
    %17 = vector.broadcast %cst_9 : f32 to vector<8x16xf32>
    %18 = arith.mulf %17, %10 : vector<8x16xf32>
    %19 = vector.broadcast %16 : vector<8x1xf32> to vector<8x16xf32>
    %20 = arith.subf %19, %18 : vector<8x16xf32>
    %21 = vector.broadcast %13 : vector<1x16xf32> to vector<8x16xf32>
    %22 = arith.addf %20, %21 : vector<8x16xf32>
    %23 = vector.broadcast %0 : f32 to vector<8x16xf32>
    %24 = arith.mulf %22, %23 : vector<8x16xf32>
    %25 = tpu.iota {dimensions = array<i32: 0>} : vector<8x16xi32>
    %cst_10 = arith.constant 0.000000e+00 : f32
    %26 = vector.broadcast %cst_10 : f32 to vector<8x16xf32>
    %cst_11 = arith.constant 0.000000e+00 : f32
    %27 = vector.broadcast %cst_11 : f32 to vector<1x16xf32>
    %cst_12 = arith.constant dense<0x7F800000> : vector<16xf32>
    %28 = vector.multi_reduction <minimumf>, %24, %cst_12 [0] : vector<8x16xf32> to vector<16xf32>
    %29 = vector.shape_cast %28 : vector<16xf32> to vector<1x16xf32>
    %30 = vector.broadcast %29 : vector<1x16xf32> to vector<8x16xf32>
    %31 = arith.cmpf oeq, %24, %30 : vector<8x16xf32>
    %c8_i32 = arith.constant 8 : i32
    %32 = vector.broadcast %c8_i32 : i32 to vector<8x16xi32>
    %33 = arith.select %31, %25, %32 : vector<8x16xi1>, vector<8x16xi32>
    %cst_13 = arith.constant dense<2147483647> : vector<16xi32>
    %34 = vector.multi_reduction <minsi>, %33, %cst_13 [0] : vector<8x16xi32> to vector<16xi32>
    %35 = vector.shape_cast %34 : vector<16xi32> to vector<1x16xi32>
    %36 = vector.broadcast %35 : vector<1x16xi32> to vector<8x16xi32>
    %37 = arith.cmpi eq, %25, %36 : vector<8x16xi32>
    %cst_14 = arith.constant 9.99999993E-9 : f32
    %38 = vector.broadcast %cst_14 : f32 to vector<1x16xf32>
    %39 = arith.addf %29, %38 : vector<1x16xf32>
    %40 = tpu.reciprocal %39 {approx = true} : vector<1x16xf32> -> vector<1x16xf32>
    %cst_15 = arith.constant 0.000000e+00 : f32
    %41 = vector.shape_cast %40 : vector<1x16xf32> to vector<1x16xf32>
    %42 = vector.broadcast %41 : vector<1x16xf32> to vector<8x16xf32>
    %43 = vector.broadcast %cst_15 : f32 to vector<8x16xf32>
    %44 = arith.select %37, %42, %43 : vector<8x16xi1>, vector<8x16xf32>
    %45 = arith.addf %26, %44 : vector<8x16xf32>
    %46 = arith.addf %27, %40 : vector<1x16xf32>
    %cst_16 = arith.constant 1.000000e+30 : f32
    %47 = vector.broadcast %cst_16 : f32 to vector<8x16xf32>
    %48 = arith.select %37, %47, %24 : vector<8x16xi1>, vector<8x16xf32>
    %cst_17 = arith.constant dense<0x7F800000> : vector<16xf32>
    %49 = vector.multi_reduction <minimumf>, %48, %cst_17 [0] : vector<8x16xf32> to vector<16xf32>
    %50 = vector.shape_cast %49 : vector<16xf32> to vector<1x16xf32>
    %51 = vector.broadcast %50 : vector<1x16xf32> to vector<8x16xf32>
    %52 = arith.cmpf oeq, %48, %51 : vector<8x16xf32>
    %c8_i32_18 = arith.constant 8 : i32
    %53 = vector.broadcast %c8_i32_18 : i32 to vector<8x16xi32>
    %54 = arith.select %52, %25, %53 : vector<8x16xi1>, vector<8x16xi32>
    %cst_19 = arith.constant dense<2147483647> : vector<16xi32>
    %55 = vector.multi_reduction <minsi>, %54, %cst_19 [0] : vector<8x16xi32> to vector<16xi32>
    %56 = vector.shape_cast %55 : vector<16xi32> to vector<1x16xi32>
    %57 = vector.broadcast %56 : vector<1x16xi32> to vector<8x16xi32>
    %58 = arith.cmpi eq, %25, %57 : vector<8x16xi32>
    %cst_20 = arith.constant 9.99999993E-9 : f32
    %59 = vector.broadcast %cst_20 : f32 to vector<1x16xf32>
    %60 = arith.addf %50, %59 : vector<1x16xf32>
    %61 = tpu.reciprocal %60 {approx = true} : vector<1x16xf32> -> vector<1x16xf32>
    %cst_21 = arith.constant 0.000000e+00 : f32
    %62 = vector.shape_cast %61 : vector<1x16xf32> to vector<1x16xf32>
    %63 = vector.broadcast %62 : vector<1x16xf32> to vector<8x16xf32>
    %64 = vector.broadcast %cst_21 : f32 to vector<8x16xf32>
    %65 = arith.select %58, %63, %64 : vector<8x16xi1>, vector<8x16xf32>
    %66 = arith.addf %45, %65 : vector<8x16xf32>
    %67 = arith.addf %46, %61 : vector<1x16xf32>
    %cst_22 = arith.constant 1.000000e+30 : f32
    %68 = vector.broadcast %cst_22 : f32 to vector<8x16xf32>
    %69 = arith.select %58, %68, %48 : vector<8x16xi1>, vector<8x16xf32>
    %cst_23 = arith.constant dense<0x7F800000> : vector<16xf32>
    %70 = vector.multi_reduction <minimumf>, %69, %cst_23 [0] : vector<8x16xf32> to vector<16xf32>
    %71 = vector.shape_cast %70 : vector<16xf32> to vector<1x16xf32>
    %72 = vector.broadcast %71 : vector<1x16xf32> to vector<8x16xf32>
    %73 = arith.cmpf oeq, %69, %72 : vector<8x16xf32>
    %c8_i32_24 = arith.constant 8 : i32
    %74 = vector.broadcast %c8_i32_24 : i32 to vector<8x16xi32>
    %75 = arith.select %73, %25, %74 : vector<8x16xi1>, vector<8x16xi32>
    %cst_25 = arith.constant dense<2147483647> : vector<16xi32>
    %76 = vector.multi_reduction <minsi>, %75, %cst_25 [0] : vector<8x16xi32> to vector<16xi32>
    %77 = vector.shape_cast %76 : vector<16xi32> to vector<1x16xi32>
    %78 = vector.broadcast %77 : vector<1x16xi32> to vector<8x16xi32>
    %79 = arith.cmpi eq, %25, %78 : vector<8x16xi32>
    %cst_26 = arith.constant 9.99999993E-9 : f32
    %80 = vector.broadcast %cst_26 : f32 to vector<1x16xf32>
    %81 = arith.addf %71, %80 : vector<1x16xf32>
    %82 = tpu.reciprocal %81 {approx = true} : vector<1x16xf32> -> vector<1x16xf32>
    %cst_27 = arith.constant 0.000000e+00 : f32
    %83 = vector.shape_cast %82 : vector<1x16xf32> to vector<1x16xf32>
    %84 = vector.broadcast %83 : vector<1x16xf32> to vector<8x16xf32>
    %85 = vector.broadcast %cst_27 : f32 to vector<8x16xf32>
    %86 = arith.select %79, %84, %85 : vector<8x16xi1>, vector<8x16xf32>
    %87 = arith.addf %66, %86 : vector<8x16xf32>
    %88 = arith.addf %67, %82 : vector<1x16xf32>
    %89 = tpu.reciprocal %88 {approx = true} : vector<1x16xf32> -> vector<1x16xf32>
    %c0_28 = arith.constant 0 : index
    %c0_29 = arith.constant 0 : index
    %c0_30 = arith.constant 0 : index
    %90 = vector.load %arg6[%c0_28, %c0_29, %c0_30] : memref<1x32x8xf32, #tpu.memory_space<vmem>>, vector<1x32x8xf32>
    %91 = vector.shape_cast %90 : vector<1x32x8xf32> to vector<32x8xf32>
    %cst_31 = arith.constant dense<0.000000e+00> : vector<32x16xf32>
    %92 = tpu.matmul %91, %87, %cst_31 {dimension_numbers = #tpu.dot_dimension_numbers<[1], [0], [0], [1], [0, 0, 1, 1], [], []>} : vector<32x8xf32>, vector<8x16xf32>, vector<32x16xf32> -> vector<32x16xf32>
    %93 = vector.broadcast %89 : vector<1x16xf32> to vector<32x16xf32>
    %94 = arith.mulf %92, %93 : vector<32x16xf32>
    %c0_32 = arith.constant 0 : index
    %c0_33 = arith.constant 0 : index
    %95 = vector.load %arg7[%c0_32, %c0_33] : memref<32x6xf32, #tpu.memory_space<vmem>>, vector<32x6xf32>
    %c0_34 = arith.constant 0 : index
    %c0_35 = arith.constant 0 : index
    %c0_36 = arith.constant 0 : index
    %96 = vector.load %arg5[%c0_34, %c0_35, %c0_36] : memref<1x6x16xf32, #tpu.memory_space<vmem>>, vector<1x6x16xf32>
    %97 = vector.shape_cast %96 : vector<1x6x16xf32> to vector<6x16xf32>
    %cst_37 = arith.constant dense<0.000000e+00> : vector<32x16xf32>
    %98 = tpu.matmul %95, %97, %cst_37 {dimension_numbers = #tpu.dot_dimension_numbers<[1], [0], [0], [1], [0, 0, 1, 1], [], []>} : vector<32x6xf32>, vector<6x16xf32>, vector<32x16xf32> -> vector<32x16xf32>
    %99 = arith.addf %94, %98 : vector<32x16xf32>
    %c0_38 = arith.constant 0 : index
    %c0_39 = arith.constant 0 : index
    %c0_40 = arith.constant 0 : index
    %100 = vector.load %arg8[%c0_38, %c0_39, %c0_40] : memref<1x32x16xf32, #tpu.memory_space<vmem>>, vector<1x32x16xf32>
    %101 = vector.shape_cast %100 : vector<1x32x16xf32> to vector<32x16xf32>
    %102 = vector.shape_cast %99 : vector<32x16xf32> to vector<1x32x16xf32>
    tpu.vector_store %arg8[%c0_38, %c0_39, %c0_40], %102 {strides = array<i32>} : memref<1x32x16xf32, #tpu.memory_space<vmem>>, vector<1x32x16xf32>,
    %103 = arith.mulf %99, %99 : vector<32x16xf32>
    %cst_41 = arith.constant dense<0.000000e+00> : vector<32xf32>
    %104 = vector.multi_reduction <add>, %99, %cst_41 [1] : vector<32x16xf32> to vector<32xf32>
    %105 = vector.shape_cast %104 : vector<32xf32> to vector<32x1xf32>
    %cst_42 = arith.constant dense<0.000000e+00> : vector<32xf32>
    %106 = vector.multi_reduction <add>, %103, %cst_42 [1] : vector<32x16xf32> to vector<32xf32>
    %107 = vector.shape_cast %106 : vector<32xf32> to vector<32x1xf32>
    %108 = tpu.concatenate %105, %107 in 0 : vector<32x1xf32>, vector<32x1xf32> -> vector<64x1xf32>
    %c0_43 = arith.constant 0 : index
    %c0_44 = arith.constant 0 : index
    %c0_45 = arith.constant 0 : index
    %c0_46 = arith.constant 0 : index
    %109 = vector.load %arg9[%c0_43, %c0_44, %c0_45, %c0_46] : memref<1x1x64x1xf32, #tpu.memory_space<vmem>>, vector<1x1x64x1xf32>
    %110 = vector.shape_cast %109 : vector<1x1x64x1xf32> to vector<64x1xf32>
    %111 = vector.shape_cast %108 : vector<64x1xf32> to vector<1x1x64x1xf32>
    tpu.vector_store %arg9[%c0_43, %c0_44, %c0_45, %c0_46], %111 {strides = array<i32>} : memref<1x1x64x1xf32, #tpu.memory_space<vmem>>, vector<1x1x64x1xf32>,
    return
  }
  func.func @transform_0(%arg0: i32, %arg1: i32) -> i32 {
    %c0_i32 = arith.constant 0 : i32
    %c0_i32_0 = arith.constant 0 : i32
    return %c0_i32 : i32
  }
  func.func @transform_1(%arg0: i32, %arg1: i32) -> (i32, i32, i32) {
    %c0_i32 = arith.constant 0 : i32
    %c0_i32_0 = arith.constant 0 : i32
    return %arg0, %c0_i32, %arg1 : i32, i32, i32
  }
  func.func @transform_2(%arg0: i32, %arg1: i32) -> (i32, i32, i32) {
    %c0_i32 = arith.constant 0 : i32
    %c0_i32_0 = arith.constant 0 : i32
    %c0_i32_1 = arith.constant 0 : i32
    return %arg0, %c0_i32, %c0_i32_0 : i32, i32, i32
  }
  func.func @transform_3(%arg0: i32, %arg1: i32) -> (i32, i32, i32) {
    %c0_i32 = arith.constant 0 : i32
    %c0_i32_0 = arith.constant 0 : i32
    return %arg0, %c0_i32, %arg1 : i32, i32, i32
  }
  func.func @transform_4(%arg0: i32, %arg1: i32) -> (i32, i32, i32) {
    %c0_i32 = arith.constant 0 : i32
    %c0_i32_0 = arith.constant 0 : i32
    %c0_i32_1 = arith.constant 0 : i32
    return %arg0, %c0_i32, %c0_i32_0 : i32, i32, i32
  }
  func.func @transform_5(%arg0: i32, %arg1: i32) -> (i32, i32) {
    %c0_i32 = arith.constant 0 : i32
    %c0_i32_0 = arith.constant 0 : i32
    %c0_i32_1 = arith.constant 0 : i32
    return %c0_i32, %c0_i32_0 : i32, i32
  }
  func.func @transform_6(%arg0: i32, %arg1: i32) -> (i32, i32, i32) {
    %c0_i32 = arith.constant 0 : i32
    %c0_i32_0 = arith.constant 0 : i32
    return %arg0, %c0_i32, %arg1 : i32, i32, i32
  }
  func.func @transform_7(%arg0: i32, %arg1: i32) -> (i32, i32, i32, i32) {
    %c0_i32 = arith.constant 0 : i32
    %c0_i32_0 = arith.constant 0 : i32
    %c0_i32_1 = arith.constant 0 : i32
    return %arg0, %arg1, %c0_i32, %c0_i32_0 : i32, i32, i32, i32
  }
}

module attributes {stable_mosaic.version = 11 : i64} {
  func.func @_bn_relu_conv_kernel(%arg0: i32, %arg1: i32, %arg2: memref<1x32x16xf32, #tpu.memory_space<vmem>>, %arg3: memref<32x1xf32, #tpu.memory_space<vmem>>, %arg4: memref<32x1xf32, #tpu.memory_space<vmem>>, %arg5: memref<16x32xf32, #tpu.memory_space<vmem>>, %arg6: memref<1x16x16xf32, #tpu.memory_space<vmem>>, %arg7: memref<1x1x32x1xf32, #tpu.memory_space<vmem>>) attributes {dimension_semantics = [#tpu.dimension_semantics<parallel>, #tpu.dimension_semantics<parallel>], iteration_bounds = array<i64: 2, 1>, scalar_prefetch = 0 : i64, scratch_operands = 0 : i64, tpu.core_type = #tpu.core_type<tc>, window_params = [{transform_indices = @transform_0, window_bounds = array<i64: 1, 32, 16>}, {pipeline_mode = #tpu.pipeline_mode<synchronous>, transform_indices = @transform_1, window_bounds = array<i64: 32, 1>}, {pipeline_mode = #tpu.pipeline_mode<synchronous>, transform_indices = @transform_2, window_bounds = array<i64: 32, 1>}, {pipeline_mode = #tpu.pipeline_mode<synchronous>, transform_indices = @transform_3, window_bounds = array<i64: 16, 32>}, {transform_indices = @transform_4, window_bounds = array<i64: 1, 16, 16>}, {transform_indices = @transform_5, window_bounds = array<i64: 1, 1, 32, 1>}]} {
    %c0 = arith.constant 0 : index
    %c0_0 = arith.constant 0 : index
    %c0_1 = arith.constant 0 : index
    %0 = vector.load %arg2[%c0, %c0_0, %c0_1] : memref<1x32x16xf32, #tpu.memory_space<vmem>>, vector<1x32x16xf32>
    %1 = vector.shape_cast %0 : vector<1x32x16xf32> to vector<32x16xf32>
    %c0_2 = arith.constant 0 : index
    %c0_3 = arith.constant 0 : index
    %2 = vector.load %arg3[%c0_2, %c0_3] : memref<32x1xf32, #tpu.memory_space<vmem>>, vector<32x1xf32>
    %3 = vector.broadcast %2 : vector<32x1xf32> to vector<32x16xf32>
    %4 = arith.mulf %1, %3 : vector<32x16xf32>
    %c0_4 = arith.constant 0 : index
    %c0_5 = arith.constant 0 : index
    %5 = vector.load %arg4[%c0_4, %c0_5] : memref<32x1xf32, #tpu.memory_space<vmem>>, vector<32x1xf32>
    %6 = vector.broadcast %5 : vector<32x1xf32> to vector<32x16xf32>
    %7 = arith.addf %4, %6 : vector<32x16xf32>
    %cst = arith.constant 0.000000e+00 : f32
    %8 = vector.broadcast %cst : f32 to vector<32x16xf32>
    %9 = arith.maximumf %7, %8 : vector<32x16xf32>
    %c0_6 = arith.constant 0 : index
    %c0_7 = arith.constant 0 : index
    %10 = vector.load %arg5[%c0_6, %c0_7] : memref<16x32xf32, #tpu.memory_space<vmem>>, vector<16x32xf32>
    %cst_8 = arith.constant dense<0.000000e+00> : vector<16x16xf32>
    %11 = tpu.matmul %10, %9, %cst_8 {dimension_numbers = #tpu.dot_dimension_numbers<[1], [0], [0], [1], [0, 0, 1, 1], [], []>} : vector<16x32xf32>, vector<32x16xf32>, vector<16x16xf32> -> vector<16x16xf32>
    %c0_9 = arith.constant 0 : index
    %c0_10 = arith.constant 0 : index
    %c0_11 = arith.constant 0 : index
    %12 = vector.load %arg6[%c0_9, %c0_10, %c0_11] : memref<1x16x16xf32, #tpu.memory_space<vmem>>, vector<1x16x16xf32>
    %13 = vector.shape_cast %12 : vector<1x16x16xf32> to vector<16x16xf32>
    %14 = vector.shape_cast %11 : vector<16x16xf32> to vector<1x16x16xf32>
    tpu.vector_store %arg6[%c0_9, %c0_10, %c0_11], %14 {strides = array<i32>} : memref<1x16x16xf32, #tpu.memory_space<vmem>>, vector<1x16x16xf32>,
    %15 = arith.mulf %11, %11 : vector<16x16xf32>
    %cst_12 = arith.constant dense<0.000000e+00> : vector<16xf32>
    %16 = vector.multi_reduction <add>, %11, %cst_12 [1] : vector<16x16xf32> to vector<16xf32>
    %17 = vector.shape_cast %16 : vector<16xf32> to vector<16x1xf32>
    %cst_13 = arith.constant dense<0.000000e+00> : vector<16xf32>
    %18 = vector.multi_reduction <add>, %15, %cst_13 [1] : vector<16x16xf32> to vector<16xf32>
    %19 = vector.shape_cast %18 : vector<16xf32> to vector<16x1xf32>
    %20 = tpu.concatenate %17, %19 in 0 : vector<16x1xf32>, vector<16x1xf32> -> vector<32x1xf32>
    %c0_14 = arith.constant 0 : index
    %c0_15 = arith.constant 0 : index
    %c0_16 = arith.constant 0 : index
    %c0_17 = arith.constant 0 : index
    %21 = vector.load %arg7[%c0_14, %c0_15, %c0_16, %c0_17] : memref<1x1x32x1xf32, #tpu.memory_space<vmem>>, vector<1x1x32x1xf32>
    %22 = vector.shape_cast %21 : vector<1x1x32x1xf32> to vector<32x1xf32>
    %23 = vector.shape_cast %20 : vector<32x1xf32> to vector<1x1x32x1xf32>
    tpu.vector_store %arg7[%c0_14, %c0_15, %c0_16, %c0_17], %23 {strides = array<i32>} : memref<1x1x32x1xf32, #tpu.memory_space<vmem>>, vector<1x1x32x1xf32>,
    return
  }
  func.func @transform_0(%arg0: i32, %arg1: i32) -> (i32, i32, i32) {
    %c0_i32 = arith.constant 0 : i32
    %c0_i32_0 = arith.constant 0 : i32
    return %arg0, %c0_i32, %arg1 : i32, i32, i32
  }
  func.func @transform_1(%arg0: i32, %arg1: i32) -> (i32, i32) {
    %c0_i32 = arith.constant 0 : i32
    %c0_i32_0 = arith.constant 0 : i32
    %c0_i32_1 = arith.constant 0 : i32
    return %c0_i32, %c0_i32_0 : i32, i32
  }
  func.func @transform_2(%arg0: i32, %arg1: i32) -> (i32, i32) {
    %c0_i32 = arith.constant 0 : i32
    %c0_i32_0 = arith.constant 0 : i32
    %c0_i32_1 = arith.constant 0 : i32
    return %c0_i32, %c0_i32_0 : i32, i32
  }
  func.func @transform_3(%arg0: i32, %arg1: i32) -> (i32, i32) {
    %c0_i32 = arith.constant 0 : i32
    %c0_i32_0 = arith.constant 0 : i32
    %c0_i32_1 = arith.constant 0 : i32
    return %c0_i32, %c0_i32_0 : i32, i32
  }
  func.func @transform_4(%arg0: i32, %arg1: i32) -> (i32, i32, i32) {
    %c0_i32 = arith.constant 0 : i32
    %c0_i32_0 = arith.constant 0 : i32
    return %arg0, %c0_i32, %arg1 : i32, i32, i32
  }
  func.func @transform_5(%arg0: i32, %arg1: i32) -> (i32, i32, i32, i32) {
    %c0_i32 = arith.constant 0 : i32
    %c0_i32_0 = arith.constant 0 : i32
    %c0_i32_1 = arith.constant 0 : i32
    return %arg0, %arg1, %c0_i32, %c0_i32_0 : i32, i32, i32, i32
  }
}

module attributes {stable_mosaic.version = 11 : i64} {
  func.func @_bn_relu_kernel(%arg0: i32, %arg1: i32, %arg2: memref<1x16x16xf32, #tpu.memory_space<vmem>>, %arg3: memref<16x1xf32, #tpu.memory_space<vmem>>, %arg4: memref<16x1xf32, #tpu.memory_space<vmem>>, %arg5: memref<1x16x16xf32, #tpu.memory_space<vmem>>) attributes {dimension_semantics = [#tpu.dimension_semantics<parallel>, #tpu.dimension_semantics<parallel>], iteration_bounds = array<i64: 2, 1>, scalar_prefetch = 0 : i64, scratch_operands = 0 : i64, tpu.core_type = #tpu.core_type<tc>, window_params = [{transform_indices = @transform_0, window_bounds = array<i64: 1, 16, 16>}, {pipeline_mode = #tpu.pipeline_mode<synchronous>, transform_indices = @transform_1, window_bounds = array<i64: 16, 1>}, {pipeline_mode = #tpu.pipeline_mode<synchronous>, transform_indices = @transform_2, window_bounds = array<i64: 16, 1>}, {transform_indices = @transform_3, window_bounds = array<i64: 1, 16, 16>}]} {
    %c0 = arith.constant 0 : index
    %c0_0 = arith.constant 0 : index
    %c0_1 = arith.constant 0 : index
    %0 = vector.load %arg2[%c0, %c0_0, %c0_1] : memref<1x16x16xf32, #tpu.memory_space<vmem>>, vector<1x16x16xf32>
    %1 = vector.shape_cast %0 : vector<1x16x16xf32> to vector<16x16xf32>
    %c0_2 = arith.constant 0 : index
    %c0_3 = arith.constant 0 : index
    %2 = vector.load %arg3[%c0_2, %c0_3] : memref<16x1xf32, #tpu.memory_space<vmem>>, vector<16x1xf32>
    %3 = vector.broadcast %2 : vector<16x1xf32> to vector<16x16xf32>
    %4 = arith.mulf %1, %3 : vector<16x16xf32>
    %c0_4 = arith.constant 0 : index
    %c0_5 = arith.constant 0 : index
    %5 = vector.load %arg4[%c0_4, %c0_5] : memref<16x1xf32, #tpu.memory_space<vmem>>, vector<16x1xf32>
    %6 = vector.broadcast %5 : vector<16x1xf32> to vector<16x16xf32>
    %7 = arith.addf %4, %6 : vector<16x16xf32>
    %cst = arith.constant 0.000000e+00 : f32
    %8 = vector.broadcast %cst : f32 to vector<16x16xf32>
    %9 = arith.maximumf %7, %8 : vector<16x16xf32>
    %c0_6 = arith.constant 0 : index
    %c0_7 = arith.constant 0 : index
    %c0_8 = arith.constant 0 : index
    %10 = vector.load %arg5[%c0_6, %c0_7, %c0_8] : memref<1x16x16xf32, #tpu.memory_space<vmem>>, vector<1x16x16xf32>
    %11 = vector.shape_cast %10 : vector<1x16x16xf32> to vector<16x16xf32>
    %12 = vector.shape_cast %9 : vector<16x16xf32> to vector<1x16x16xf32>
    tpu.vector_store %arg5[%c0_6, %c0_7, %c0_8], %12 {strides = array<i32>} : memref<1x16x16xf32, #tpu.memory_space<vmem>>, vector<1x16x16xf32>,
    return
  }
  func.func @transform_0(%arg0: i32, %arg1: i32) -> (i32, i32, i32) {
    %c0_i32 = arith.constant 0 : i32
    %c0_i32_0 = arith.constant 0 : i32
    return %arg0, %c0_i32, %arg1 : i32, i32, i32
  }
  func.func @transform_1(%arg0: i32, %arg1: i32) -> (i32, i32) {
    %c0_i32 = arith.constant 0 : i32
    %c0_i32_0 = arith.constant 0 : i32
    %c0_i32_1 = arith.constant 0 : i32
    return %c0_i32, %c0_i32_0 : i32, i32
  }
  func.func @transform_2(%arg0: i32, %arg1: i32) -> (i32, i32) {
    %c0_i32 = arith.constant 0 : i32
    %c0_i32_0 = arith.constant 0 : i32
    %c0_i32_1 = arith.constant 0 : i32
    return %c0_i32, %c0_i32_0 : i32, i32
  }
  func.func @transform_3(%arg0: i32, %arg1: i32) -> (i32, i32, i32) {
    %c0_i32 = arith.constant 0 : i32
    %c0_i32_0 = arith.constant 0 : i32
    return %arg0, %c0_i32, %arg1 : i32, i32, i32
  }
}

</mosaic_0001>

<llo_original>
// kernel: pointnet_fp_forward.4
$region0: #{pointnet_fp_forward.4}
  #allocation0 [shape = 'u32[]', space=smem, size = 0x4, offset = 0x4, fixed_abs, tag = 'smem constant byte address 0x4 - core index']
  #allocation1 [shape = 'u32[72,128]{1,0:T(1,128)}', space=vmem, size = 0x9000, scoped, tag = 'internal scratch']
  %s0 = inlined_call_operand.vmem [shape: f32[2,32,16], index: 0, kind: input, shape index: {}]
  %s1 = inlined_call_operand.vmem [shape: f32[32,1], index: 1, kind: input, shape index: {}]
  %s2 = inlined_call_operand.vmem [shape: f32[32,1], index: 2, kind: input, shape index: {}]
  %s3 = inlined_call_operand.vmem [shape: f32[16,32], index: 3, kind: input, shape index: {}]
  %s4 = inlined_call_operand.vmem [shape: f32[2,16,16], index: 4, kind: output, shape index: {0}]
  %s5 = inlined_call_operand.vmem [shape: f32[2,1,32,1], index: 5, kind: output, shape index: {1}]
  %6 = xla_tuple %s4, %s5
  %s7 = sld [smem:[#allocation0]]
  $region57: #{pointnet_fp_forward.4} parent=0
    _
  %s9 = ssub.s32 1, %s7
  %s10 = scalar_select 0, %s9, %s7
  loop: start=0, step=1, limit=4
  $region2: #{pointnet_fp_forward.4} parent=0 // loop_pre_header
    _
  $region3: #{pointnet_fp_forward.4} parent=0 // loop_header
    %s12 = sphi 0, %s16
    %p13 = scmp.ge.s32.totalorder %s12, 4
    %s19 = sphi 0, %s31
    %s20 = sphi 0, %s27
    %s21 = sphi 0, %s19
    %s22 = sphi 0, %s20
    %s23 = sphi 0, %s21
    %s24 = sphi 0, %s22
    %s36 = sphi 0, %s38
    %s39 = sphi 0, %s36
    %s40 = sphi 0, %s39
    %s56 = sphi 0, %s40
    %s60 = sphi 0, %s60
    %s62 = sphi 0, %s60
    %s63 = sphi 0, %s62
    %s77 = sphi 0, %s63
    %s81 = sphi 0, %s81
    %s83 = sphi 0, %s81
    %s84 = sphi 0, %s83
    %s98 = sphi 0, %s84
    %s102 = sphi 0, %s102
    %s104 = sphi 0, %s102
    %s105 = sphi 0, %s104
    %s119 = sphi 0, %s105
    %s127 = sphi 0, %s129
    %s130 = sphi 0, %s127
    %s131 = sphi 0, %s130
    %s147 = sphi 0, %s131
    %s155 = sphi 0, %s157
    %s158 = sphi 0, %s155
    %s159 = sphi 0, %s158
    %s175 = sphi 0, %s159
  $region4: #{pointnet_fp_forward.4} parent=0 // loop_header_branch
    %15 = sbr.rel (%p13) target = $region8
  $region5: #{pointnet_fp_forward.4} parent=0 // loop_body
    %s17 = ssub.s32 %s12, 1
    %s18 = ssub.s32 %s12, 2
    %s25 = sadd.s32 1, %s20
    %p26 = scmp.ge.s32.totalorder %s25, 1
    %s27 = scalar_select %p26, 0, %s25
    %s28 = sadd.s32 1, %s19
    %s29 = scalar_select %p26, %s28, %s19
    %p30 = scmp.ge.s32.totalorder %s29, 2
    %s31 = scalar_select %p30, 0, %s29
    %s32 = ssub.s32 %s19, %s31
    %s33 = ssub.s32 %s20, %s27
    %s34 = sor.u32 %s32, %s33
    %p35 = scmp.eq.s32.totalorder %s34, 0
    %s37 = sadd.s32 %s36, 1
    %s38 = scalar_select %p35, %s36, %s37
    %p41 = pneg %p35
    %p42 = scmp.eq.s32.totalorder %s12, 1
    %p43 = por %p41, %p42
    %p44 = scmp.ne.s32.totalorder %s36, %s39
    %p45 = scmp.eq.s32.totalorder %s12, 0
    %p46 = por %p44, %p45
    %p47 = scmp.ne.s32.totalorder %s36, %s39
    %p48 = scmp.eq.s32.totalorder %s17, 1
    %p49 = por %p47, %p48
    %p50 = scmp.ne.s32.totalorder %s39, %s40
    %p51 = scmp.eq.s32.totalorder %s17, 0
    %p52 = por %p50, %p51
    %p53 = scmp.ne.s32.totalorder %s39, %s40
    %p54 = scmp.eq.s32.totalorder %s18, 1
    %p55 = por %p53, %p54
    %p57 = scmp.ne.s32.totalorder %s40, %s56
    %p58 = scmp.eq.s32.totalorder %s18, 0
    %p59 = por %p57, %p58
    %s61 = sadd.s32 %s60, 1
    %p64 = scmp.eq.s32.totalorder %s12, 1
    %p65 = scmp.ne.s32.totalorder %s60, %s62
    %p66 = scmp.eq.s32.totalorder %s12, 0
    %p67 = por %p65, %p66
    %p68 = scmp.ne.s32.totalorder %s60, %s62
    %p69 = scmp.eq.s32.totalorder %s17, 1
    %p70 = por %p68, %p69
    %p71 = scmp.ne.s32.totalorder %s62, %s63
    %p72 = scmp.eq.s32.totalorder %s17, 0
    %p73 = por %p71, %p72
    %p74 = scmp.ne.s32.totalorder %s62, %s63
    %p75 = scmp.eq.s32.totalorder %s18, 1
    %p76 = por %p74, %p75
    %p78 = scmp.ne.s32.totalorder %s63, %s77
    %p79 = scmp.eq.s32.totalorder %s18, 0
    %p80 = por %p78, %p79
    %s82 = sadd.s32 %s81, 1
    %p85 = scmp.eq.s32.totalorder %s12, 1
    %p86 = scmp.ne.s32.totalorder %s81, %s83
    %p87 = scmp.eq.s32.totalorder %s12, 0
    %p88 = por %p86, %p87
    %p89 = scmp.ne.s32.totalorder %s81, %s83
    %p90 = scmp.eq.s32.totalorder %s17, 1
    %p91 = por %p89, %p90
    %p92 = scmp.ne.s32.totalorder %s83, %s84
    %p93 = scmp.eq.s32.totalorder %s17, 0
    %p94 = por %p92, %p93
    %p95 = scmp.ne.s32.totalorder %s83, %s84
    %p96 = scmp.eq.s32.totalorder %s18, 1
    %p97 = por %p95, %p96
    %p99 = scmp.ne.s32.totalorder %s84, %s98
    %p100 = scmp.eq.s32.totalorder %s18, 0
    %p101 = por %p99, %p100
    %s103 = sadd.s32 %s102, 1
    %p106 = scmp.eq.s32.totalorder %s12, 1
    %p107 = scmp.ne.s32.totalorder %s102, %s104
    %p108 = scmp.eq.s32.totalorder %s12, 0
    %p109 = por %p107, %p108
    %p110 = scmp.ne.s32.totalorder %s102, %s104
    %p111 = scmp.eq.s32.totalorder %s17, 1
    %p112 = por %p110, %p111
    %p113 = scmp.ne.s32.totalorder %s104, %s105
    %p114 = scmp.eq.s32.totalorder %s17, 0
    %p115 = por %p113, %p114
    %p116 = scmp.ne.s32.totalorder %s104, %s105
    %p117 = scmp.eq.s32.totalorder %s18, 1
    %p118 = por %p116, %p117
    %p120 = scmp.ne.s32.totalorder %s105, %s119
    %p121 = scmp.eq.s32.totalorder %s18, 0
    %p122 = por %p120, %p121
    %s123 = ssub.s32 %s19, %s31
    %s124 = ssub.s32 %s20, %s27
    %s125 = sor.u32 %s123, %s124
    %p126 = scmp.eq.s32.totalorder %s125, 0
    %s128 = sadd.s32 %s127, 1
    %s129 = scalar_select %p126, %s127, %s128
    %p132 = pneg %p126
    %p133 = scmp.eq.s32.totalorder %s12, 1
    %p134 = por %p132, %p133
    %p135 = scmp.ne.s32.totalorder %s127, %s130
    %p136 = scmp.eq.s32.totalorder %s12, 0
    %p137 = por %p135, %p136
    %p138 = scmp.ne.s32.totalorder %s127, %s130
    %p139 = scmp.eq.s32.totalorder %s17, 1
    %p140 = por %p138, %p139
    %p141 = scmp.ne.s32.totalorder %s130, %s131
    %p142 = scmp.eq.s32.totalorder %s17, 0
    %p143 = por %p141, %p142
    %p144 = scmp.ne.s32.totalorder %s130, %s131
    %p145 = scmp.eq.s32.totalorder %s18, 1
    %p146 = por %p144, %p145
    %p148 = scmp.ne.s32.totalorder %s131, %s147
    %p149 = scmp.eq.s32.totalorder %s18, 0
    %p150 = por %p148, %p149
    %s151 = ssub.s32 %s19, %s31
    %s152 = ssub.s32 %s20, %s27
    %s153 = sor.u32 %s151, %s152
    %p154 = scmp.eq.s32.totalorder %s153, 0
    %s156 = sadd.s32 %s155, 1
    %s157 = scalar_select %p154, %s155, %s156
    %p160 = pneg %p154
    %p161 = scmp.eq.s32.totalorder %s12, 1
    %p162 = por %p160, %p161
    %p163 = scmp.ne.s32.totalorder %s155, %s158
    %p164 = scmp.eq.s32.totalorder %s12, 0
    %p165 = por %p163, %p164
    %p166 = scmp.ne.s32.totalorder %s155, %s158
    %p167 = scmp.eq.s32.totalorder %s17, 1
    %p168 = por %p166, %p167
    %p169 = scmp.ne.s32.totalorder %s158, %s159
    %p170 = scmp.eq.s32.totalorder %s17, 0
    %p171 = por %p169, %p170
    %p172 = scmp.ne.s32.totalorder %s158, %s159
    %p173 = scmp.eq.s32.totalorder %s18, 1
    %p174 = por %p172, %p173
    %p176 = scmp.ne.s32.totalorder %s159, %s175
    %p177 = scmp.eq.s32.totalorder %s18, 0
    %p178 = por %p176, %p177
    %p179 = scmp.le.s32.totalorder 1, %s12
    %p180 = scmp.lt.s32.totalorder %s12, 3
    %p181 = pnand %p179, %p180
    %p182 = pneg %p181
    // Predicated region
    $region9: #{pointnet_fp_forward.4} parent=5 // pred_check
      _
    $region10: #{pointnet_fp_forward.4} parent=5 // pred_check_branch
      %184 = sbr.rel (%p181) target = $region12
    $region11: #{pointnet_fp_forward.4} parent=5 // pred_region
      %s185 = ssub.s32 %s12, 1
      // Predicated region
      $region13: #{pointnet_fp_forward.4} parent=11 // pred_check
        %p186 = pneg %p73
      $region14: #{pointnet_fp_forward.4} parent=11 // pred_check_branch
        %188 = sbr.rel (%p186) target = $region16
      $region15: #{pointnet_fp_forward.4} parent=11 // pred_region
        _
      $region16: #{pointnet_fp_forward.4} parent=11 // pred_fallthru
        _
      // Predicated region
      $region17: #{pointnet_fp_forward.4} parent=11 // pred_check
        %p189 = pneg %p94
      $region18: #{pointnet_fp_forward.4} parent=11 // pred_check_branch
        %191 = sbr.rel (%p189) target = $region20
      $region19: #{pointnet_fp_forward.4} parent=11 // pred_region
        _
      $region20: #{pointnet_fp_forward.4} parent=11 // pred_fallthru
        _
      // Predicated region
      $region21: #{pointnet_fp_forward.4} parent=11 // pred_check
        %p192 = pneg %p115
      $region22: #{pointnet_fp_forward.4} parent=11 // pred_check_branch
        %194 = sbr.rel (%p192) target = $region24
      $region23: #{pointnet_fp_forward.4} parent=11 // pred_region
        _
      $region24: #{pointnet_fp_forward.4} parent=11 // pred_fallthru
        _
    $region12: #{pointnet_fp_forward.4} parent=5 // pred_fallthru
      _
    %p195 = scmp.lt.s32.totalorder %s12, 2
    // Predicated region
    $region25: #{pointnet_fp_forward.4} parent=5 // pred_check
      %p196 = pneg %p195
    $region26: #{pointnet_fp_forward.4} parent=5 // pred_check_branch
      %198 = sbr.rel (%p196) target = $region28
    $region27: #{pointnet_fp_forward.4} parent=5 // pred_region
      // Predicated region
      $region29: #{pointnet_fp_forward.4} parent=27 // pred_check
        %p199 = pneg %p46
      $region30: #{pointnet_fp_forward.4} parent=27 // pred_check_branch
        %201 = sbr.rel (%p199) target = $region32
      $region31: #{pointnet_fp_forward.4} parent=27 // pred_region
        %p202 = scmp.lt.s32.totalorder %s19, 1
        %s203 = scalar_select %p202, %s19, 1
        %p204 = scmp.lt.s32.totalorder %s20, 0
        %s205 = scalar_select %p204, %s20, 0
        %s206 = smul.addr %s203, 4
        %s207 = sadd.s32 %s205, %s206
        %s208 = smul.addr %s207, 8
        %s209 = scalar_lea.vmem %s0, %s208
      $region32: #{pointnet_fp_forward.4} parent=27 // pred_fallthru
        _
    $region28: #{pointnet_fp_forward.4} parent=5 // pred_fallthru
      _
    %p210 = scmp.le.s32.totalorder 1, %s12
    %p211 = scmp.lt.s32.totalorder %s12, 3
    %p212 = pnand %p210, %p211
    %p213 = pneg %p212
    // Predicated region
    $region33: #{pointnet_fp_forward.4} parent=5 // pred_check
      _
    $region34: #{pointnet_fp_forward.4} parent=5 // pred_check_branch
      %215 = sbr.rel (%p212) target = $region36
    $region35: #{pointnet_fp_forward.4} parent=5 // pred_region
      %s216 = ssub.s32 %s12, 1
      %p217 = scmp.lt.s32.totalorder %s21, 1
      %s218 = scalar_select %p217, %s21, 1
      %p219 = scmp.lt.s32.totalorder %s22, 0
      %s220 = scalar_select %p219, %s22, 0
      %s221 = smul.addr %s218, 4
      %s222 = sadd.s32 %s220, %s221
      %s223 = smul.addr %s222, 8
      %s224 = scalar_lea.vmem %s0, %s223
      %p225 = pneg %p52
      %p226 = pneg %p49
      %p227 = pneg %p73
      %p228 = pneg %p70
      %p229 = pneg %p94
      %p230 = pneg %p91
      %p231 = pneg %p115
      %p232 = pneg %p112
      %p233 = pneg %p143
      %p234 = pneg %p140
      %p235 = scmp.lt.s32.totalorder %s21, 1
      %s236 = scalar_select %p235, %s21, 1
      %p237 = scmp.lt.s32.totalorder %s22, 0
      %s238 = scalar_select %p237, %s22, 0
      %s239 = smul.addr %s236, 2
      %s240 = sadd.s32 %s238, %s239
      %s241 = smul.addr %s240, 8
      %s242 = scalar_lea.vmem %s4, %s241
      %p243 = pneg %p171
      %p244 = pneg %p168
      %p245 = scmp.lt.s32.totalorder %s21, 1
      %s246 = scalar_select %p245, %s21, 1
      %p247 = scmp.lt.s32.totalorder %s22, 0
      %s248 = scalar_select %p247, %s22, 0
      %s249 = smul.addr %s248, 4
      %s250 = smul.addr %s246, 4
      %s251 = sadd.s32 %s249, %s250
      %s252 = smul.addr %s251, 8
      %s253 = scalar_lea.vmem %s5, %s252
      %p254 = scmp.lt.s32.totalorder %s21, 1
      %s255 = scalar_select %p254, %s21, 1
      %p256 = scmp.lt.s32.totalorder %s22, 0
      %s257 = scalar_select %p256, %s22, 0
      %s258 = smul.addr %s255, 4
      %s259 = sadd.s32 %s257, %s258
      %s260 = smul.addr %s259, 8
      %s261 = scalar_lea.vmem %s0, %s260
      %p262 = scmp.lt.s32.totalorder %s21, 1
      %s263 = scalar_select %p262, %s21, 1
      %p264 = scmp.lt.s32.totalorder %s22, 0
      %s265 = scalar_select %p264, %s22, 0
      %s266 = smul.addr %s263, 2
      %s267 = sadd.s32 %s265, %s266
      %s268 = smul.addr %s267, 8
      %s269 = scalar_lea.vmem %s4, %s268
      %p270 = scmp.lt.s32.totalorder %s21, 1
      %s271 = scalar_select %p270, %s21, 1
      %p272 = scmp.lt.s32.totalorder %s22, 0
      %s273 = scalar_select %p272, %s22, 0
      %s274 = smul.addr %s273, 4
      %s275 = smul.addr %s271, 4
      %s276 = sadd.s32 %s274, %s275
      %s277 = smul.addr %s276, 8
      %s278 = scalar_lea.vmem %s5, %s277
      %v279 = vld [vmem:[%s261] sm:$0xff]
      %v280 = vld [vmem:[%s261 + $0x8] sm:$0xff]
      %v281 = vld [vmem:[%s261 + $0x10] sm:$0xff]
      %v282 = vld [vmem:[%s261 + $0x18] sm:$0xff]
      %v283 = vld [vmem:[%s1] sm:$0xff]
      %v284 = vld [vmem:[%s1 + $0x8] sm:$0xff]
      %v285 = vld [vmem:[%s1 + $0x10] sm:$0xff]
      %v286 = vld [vmem:[%s1 + $0x18] sm:$0xff]
      %288 = vset.pattern.permute.xlu0 0
      %289 = vperm.xlu0 %288, %v283
      %v290 = vpop.permute.xlu0 %289
      %293 = vset.pattern.permute.xlu0 0
      %294 = vperm.xlu0 %293, %v284
      %v295 = vpop.permute.xlu0 %294
      %298 = vset.pattern.permute.xlu0 0
      %299 = vperm.xlu0 %298, %v285
      %v300 = vpop.permute.xlu0 %299
      %303 = vset.pattern.permute.xlu0 0
      %304 = vperm.xlu0 %303, %v286
      %v305 = vpop.permute.xlu0 %304
      %v307 = vmul.f32 %v279, %v290
      %v308 = vmul.f32 %v280, %v295
      %v309 = vmul.f32 %v281, %v300
      %v310 = vmul.f32 %v282, %v305
      %v311 = vld [vmem:[%s2] sm:$0xff]
      %v312 = vld [vmem:[%s2 + $0x8] sm:$0xff]
      %v313 = vld [vmem:[%s2 + $0x10] sm:$0xff]
      %v314 = vld [vmem:[%s2 + $0x18] sm:$0xff]
      %316 = vset.pattern.permute.xlu0 0
      %317 = vperm.xlu0 %316, %v311
      %v318 = vpop.permute.xlu0 %317
      %321 = vset.pattern.permute.xlu0 0
      %322 = vperm.xlu0 %321, %v312
      %v323 = vpop.permute.xlu0 %322
      %326 = vset.pattern.permute.xlu0 0
      %327 = vperm.xlu0 %326, %v313
      %v328 = vpop.permute.xlu0 %327
      %331 = vset.pattern.permute.xlu0 0
      %332 = vperm.xlu0 %331, %v314
      %v333 = vpop.permute.xlu0 %332
      %v335 = vadd.f32 %v307, %v318
      %v336 = vadd.f32 %v308, %v323
      %v337 = vadd.f32 %v309, %v328
      %v338 = vadd.f32 %v310, %v333
      %v339 = vmax.f32 %v335, 0.0
      %v340 = vmax.f32 %v336, 0.0
      %v341 = vmax.f32 %v337, 0.0
      %v342 = vmax.f32 %v338, 0.0
      %v343 = vld [vmem:[%s3] sm:$0xff]
      %v344 = vld [vmem:[%s3 + $0x8] sm:$0xff]
      %vm345 = vcmask 261120
      %v347 = vsel %vm345, %v343, 0
      %v350 = vsel %vm345, %v344, 0
      %352 = vmatpush.msra.mxu0 0.0
      %353 = vmatpush.msra.mxu0 0.0
      %354 = vmatpush.msra.mxu0 0.0
      %355 = vmatpush.msra.mxu0 0.0
      %356 = vmatpush.msra.mxu0 0.0
      %357 = vmatpush.msra.mxu0 0.0
      %358 = vmatpush.msra.mxu0 0.0
      %359 = vmatpush.msra.mxu0 0.0
      %360 = vmatpush.msra.mxu0 0.0
      %361 = vmatpush.msra.mxu0 0.0
      %362 = vmatpush.msra.mxu0 0.0
      %363 = vmatpush.msra.mxu0 0.0
      %364 = vmatpush.msra.mxu0 %v342
      %365 = vmatpush.msra.mxu0 %v341
      %366 = vmatpush.msra.mxu0 %v340
      %367 = vmatpush.msra.mxu0 %v339
      %368 = vmatmul.f32.gmra.mxu0 %v347
      %v369 = vpop.f32.mrf.mxu0
      %v370 = vadd.f32 0.0, %v369
      %371 = vmatmul.f32.gmra.mxu0 %v350
      %v372 = vpop.f32.mrf.mxu0
      %v373 = vadd.f32 0.0, %v372
      %374 = vdwg.mxu0
      %vm375 = vcmask 130048
      %376 = vst.msk [vmem:[%s269] sm:$0xff] %vm375, %v370
      %377 = vst.msk [vmem:[%s269 + $0x8] sm:$0xff] %vm375, %v373
      %v378 = vmul.f32 %v370, %v370
      %v379 = vmul.f32 %v373, %v373
      %v380 = vsel %vm375, %v370, 0.0
      %381 = vadd.xlane.f32.xlu0 %v380
      %v382 = vpop.xlane.xlu0 %381
      %v383 = vsel %vm375, %v373, 0.0
      %384 = vadd.xlane.f32.xlu0 %v383
      %v385 = vpop.xlane.xlu0 %384
      %v386 = vsel %vm375, %v378, 0.0
      %387 = vadd.xlane.f32.xlu0 %v386
      %v388 = vpop.xlane.xlu0 %387
      %v389 = vsel %vm375, %v379, 0.0
      %390 = vadd.xlane.f32.xlu0 %v389
      %v391 = vpop.xlane.xlu0 %390
      %vm392 = vcmask 7168
      %393 = vst.msk [vmem:[%s278] sm:$0xff] %vm392, %v382
      %394 = vst.msk [vmem:[%s278 + $0x8] sm:$0xff] %vm392, %v385
      %395 = vst.msk [vmem:[%s278 + $0x10] sm:$0xff] %vm392, %v388
      %396 = vst.msk [vmem:[%s278 + $0x18] sm:$0xff] %vm392, %v391
      %p397 = scmp.lt.s32.totalorder %s21, 1
      %s398 = scalar_select %p397, %s21, 1
      %p399 = scmp.lt.s32.totalorder %s22, 0
      %s400 = scalar_select %p399, %s22, 0
      %s401 = smul.addr %s398, 2
      %s402 = sadd.s32 %s400, %s401
      %s403 = smul.addr %s402, 8
      %s404 = scalar_lea.vmem %s4, %s403
      %p405 = scmp.lt.s32.totalorder %s21, 1
      %s406 = scalar_select %p405, %s21, 1
      %p407 = scmp.lt.s32.totalorder %s22, 0
      %s408 = scalar_select %p407, %s22, 0
      %s409 = smul.addr %s408, 4
      %s410 = smul.addr %s406, 4
      %s411 = sadd.s32 %s409, %s410
      %s412 = smul.addr %s411, 8
      %s413 = scalar_lea.vmem %s5, %s412
      // Predicated region
      $region37: #{pointnet_fp_forward.4} parent=35 // pred_check
        %p414 = pneg %p140
      $region38: #{pointnet_fp_forward.4} parent=35 // pred_check_branch
        %416 = sbr.rel (%p414) target = $region40
      $region39: #{pointnet_fp_forward.4} parent=35 // pred_region
        _
      $region40: #{pointnet_fp_forward.4} parent=35 // pred_fallthru
        _
      // Predicated region
      $region41: #{pointnet_fp_forward.4} parent=35 // pred_check
        %p417 = pneg %p168
      $region42: #{pointnet_fp_forward.4} parent=35 // pred_check_branch
        %419 = sbr.rel (%p417) target = $region44
      $region43: #{pointnet_fp_forward.4} parent=35 // pred_region
        _
      $region44: #{pointnet_fp_forward.4} parent=35 // pred_fallthru
        _
    $region36: #{pointnet_fp_forward.4} parent=5 // pred_fallthru
      _
    %p420 = scmp.le.s32.totalorder 2, %s12
    // Predicated region
    $region45: #{pointnet_fp_forward.4} parent=5 // pred_check
      %p421 = pneg %p420
    $region46: #{pointnet_fp_forward.4} parent=5 // pred_check_branch
      %423 = sbr.rel (%p421) target = $region48
    $region47: #{pointnet_fp_forward.4} parent=5 // pred_region
      %s424 = ssub.s32 %s12, 2
      // Predicated region
      $region49: #{pointnet_fp_forward.4} parent=47 // pred_check
        %p425 = pneg %p146
      $region50: #{pointnet_fp_forward.4} parent=47 // pred_check_branch
        %427 = sbr.rel (%p425) target = $region52
      $region51: #{pointnet_fp_forward.4} parent=47 // pred_region
        %p428 = scmp.lt.s32.totalorder %s23, 1
        %s429 = scalar_select %p428, %s23, 1
        %p430 = scmp.lt.s32.totalorder %s24, 0
        %s431 = scalar_select %p430, %s24, 0
        %s432 = smul.addr %s429, 2
        %s433 = sadd.s32 %s431, %s432
        %s434 = smul.addr %s433, 8
        %s435 = scalar_lea.vmem %s4, %s434
      $region52: #{pointnet_fp_forward.4} parent=47 // pred_fallthru
        _
      // Predicated region
      $region53: #{pointnet_fp_forward.4} parent=47 // pred_check
        %p436 = pneg %p174
      $region54: #{pointnet_fp_forward.4} parent=47 // pred_check_branch
        %438 = sbr.rel (%p436) target = $region56
      $region55: #{pointnet_fp_forward.4} parent=47 // pred_region
        %p439 = scmp.lt.s32.totalorder %s23, 1
        %s440 = scalar_select %p439, %s23, 1
        %p441 = scmp.lt.s32.totalorder %s24, 0
        %s442 = scalar_select %p441, %s24, 0
        %s443 = smul.addr %s442, 4
        %s444 = smul.addr %s440, 4
        %s445 = sadd.s32 %s443, %s444
        %s446 = smul.addr %s445, 8
        %s447 = scalar_lea.vmem %s5, %s446
      $region56: #{pointnet_fp_forward.4} parent=47 // pred_fallthru
        _
    $region48: #{pointnet_fp_forward.4} parent=5 // pred_fallthru
      _
  $region6: #{pointnet_fp_forward.4} parent=0 // loop_footer
    %s16 = sadd.s32 1, %s12
  $region7: #{pointnet_fp_forward.4} parent=0 // loop_footer_branch
    %11 = sbr.rel target = $region3
  $region8: #{pointnet_fp_forward.4} parent=0 // loop_exit
    _

// kernel: pointnet_fp_forward.5
$region0: #{pointnet_fp_forward.5}
  #allocation0 [shape = 'u32[]', space=smem, size = 0x4, offset = 0x4, fixed_abs, tag = 'smem constant byte address 0x4 - core index']
  #allocation1 [shape = 'u32[72,128]{1,0:T(1,128)}', space=vmem, size = 0x9000, scoped, tag = 'internal scratch']
  %s0 = inlined_call_operand.vmem [shape: f32[2,16,16], index: 0, kind: input, shape index: {}]
  %s1 = inlined_call_operand.vmem [shape: f32[16,1], index: 1, kind: input, shape index: {}]
  %s2 = inlined_call_operand.vmem [shape: f32[16,1], index: 2, kind: input, shape index: {}]
  %s3 = inlined_call_operand.hbm [shape: f32[2,16,16], index: 3, kind: output, shape index: {}]
  %s4 = sld [smem:[#allocation0]]
  $region45: #{pointnet_fp_forward.5} parent=0
    _
  %s6 = ssub.s32 1, %s4
  %s7 = scalar_select 0, %s6, %s4
  $region1: #{pointnet_fp_forward.5} parent=0
    #allocation2 [shape = 'u8[16384]{0}', space=vmem, size = 0x4000, scoped, tag = 'output window, operand 0']
    #allocation3 [shape = 's32[2]{0}', space=sflag, size = 0x8, scoped, tag = 'scoped memory for pointnet_fp_forward.5']
    %8 = vsyncpa [#allocation3], 0
    %s9 = scalar_lea.sflag [#allocation3], 1
    %10 = vsyncpa %s9, 0
    loop: start=0, step=1, limit=4
    $region2: #{pointnet_fp_forward.5} parent=1 // loop_pre_header
      _
    $region3: #{pointnet_fp_forward.5} parent=1 // loop_header
      %s12 = sphi 0, %s16
      %p13 = scmp.ge.s32.totalorder %s12, 4
      %s19 = sphi 0, %s31
      %s20 = sphi 0, %s27
      %s21 = sphi 0, %s19
      %s22 = sphi 0, %s20
      %s23 = sphi 0, %s21
      %s24 = sphi 0, %s22
      %s36 = sphi 0, %s38
      %s39 = sphi 0, %s36
      %s40 = sphi 0, %s39
      %s56 = sphi 0, %s40
      %s60 = sphi 0, %s60
      %s62 = sphi 0, %s60
      %s63 = sphi 0, %s62
      %s77 = sphi 0, %s63
      %s81 = sphi 0, %s81
      %s83 = sphi 0, %s81
      %s84 = sphi 0, %s83
      %s98 = sphi 0, %s84
      %s106 = sphi 0, %s108
      %s109 = sphi 0, %s106
      %s110 = sphi 0, %s109
      %s126 = sphi 0, %s110
    $region4: #{pointnet_fp_forward.5} parent=1 // loop_header_branch
      %15 = sbr.rel (%p13) target = $region8
    $region5: #{pointnet_fp_forward.5} parent=1 // loop_body
      %s17 = ssub.s32 %s12, 1
      %s18 = ssub.s32 %s12, 2
      %s25 = sadd.s32 1, %s20
      %p26 = scmp.ge.s32.totalorder %s25, 1
      %s27 = scalar_select %p26, 0, %s25
      %s28 = sadd.s32 1, %s19
      %s29 = scalar_select %p26, %s28, %s19
      %p30 = scmp.ge.s32.totalorder %s29, 2
      %s31 = scalar_select %p30, 0, %s29
      %s32 = ssub.s32 %s19, %s31
      %s33 = ssub.s32 %s20, %s27
      %s34 = sor.u32 %s32, %s33
      %p35 = scmp.eq.s32.totalorder %s34, 0
      %s37 = sadd.s32 %s36, 1
      %s38 = scalar_select %p35, %s36, %s37
      %p41 = pneg %p35
      %p42 = scmp.eq.s32.totalorder %s12, 1
      %p43 = por %p41, %p42
      %p44 = scmp.ne.s32.totalorder %s36, %s39
      %p45 = scmp.eq.s32.totalorder %s12, 0
      %p46 = por %p44, %p45
      %p47 = scmp.ne.s32.totalorder %s36, %s39
      %p48 = scmp.eq.s32.totalorder %s17, 1
      %p49 = por %p47, %p48
      %p50 = scmp.ne.s32.totalorder %s39, %s40
      %p51 = scmp.eq.s32.totalorder %s17, 0
      %p52 = por %p50, %p51
      %p53 = scmp.ne.s32.totalorder %s39, %s40
      %p54 = scmp.eq.s32.totalorder %s18, 1
      %p55 = por %p53, %p54
      %p57 = scmp.ne.s32.totalorder %s40, %s56
      %p58 = scmp.eq.s32.totalorder %s18, 0
      %p59 = por %p57, %p58
      %s61 = sadd.s32 %s60, 1
      %p64 = scmp.eq.s32.totalorder %s12, 1
      %p65 = scmp.ne.s32.totalorder %s60, %s62
      %p66 = scmp.eq.s32.totalorder %s12, 0
      %p67 = por %p65, %p66
      %p68 = scmp.ne.s32.totalorder %s60, %s62
      %p69 = scmp.eq.s32.totalorder %s17, 1
      %p70 = por %p68, %p69
      %p71 = scmp.ne.s32.totalorder %s62, %s63
      %p72 = scmp.eq.s32.totalorder %s17, 0
      %p73 = por %p71, %p72
      %p74 = scmp.ne.s32.totalorder %s62, %s63
      %p75 = scmp.eq.s32.totalorder %s18, 1
      %p76 = por %p74, %p75
      %p78 = scmp.ne.s32.totalorder %s63, %s77
      %p79 = scmp.eq.s32.totalorder %s18, 0
      %p80 = por %p78, %p79
      %s82 = sadd.s32 %s81, 1
      %p85 = scmp.eq.s32.totalorder %s12, 1
      %p86 = scmp.ne.s32.totalorder %s81, %s83
      %p87 = scmp.eq.s32.totalorder %s12, 0
      %p88 = por %p86, %p87
      %p89 = scmp.ne.s32.totalorder %s81, %s83
      %p90 = scmp.eq.s32.totalorder %s17, 1
      %p91 = por %p89, %p90
      %p92 = scmp.ne.s32.totalorder %s83, %s84
      %p93 = scmp.eq.s32.totalorder %s17, 0
      %p94 = por %p92, %p93
      %p95 = scmp.ne.s32.totalorder %s83, %s84
      %p96 = scmp.eq.s32.totalorder %s18, 1
      %p97 = por %p95, %p96
      %p99 = scmp.ne.s32.totalorder %s84, %s98
      %p100 = scmp.eq.s32.totalorder %s18, 0
      %p101 = por %p99, %p100
      %s102 = ssub.s32 %s19, %s31
      %s103 = ssub.s32 %s20, %s27
      %s104 = sor.u32 %s102, %s103
      %p105 = scmp.eq.s32.totalorder %s104, 0
      %s107 = sadd.s32 %s106, 1
      %s108 = scalar_select %p105, %s106, %s107
      %p111 = pneg %p105
      %p112 = scmp.eq.s32.totalorder %s12, 1
      %p113 = por %p111, %p112
      %p114 = scmp.ne.s32.totalorder %s106, %s109
      %p115 = scmp.eq.s32.totalorder %s12, 0
      %p116 = por %p114, %p115
      %p117 = scmp.ne.s32.totalorder %s106, %s109
      %p118 = scmp.eq.s32.totalorder %s17, 1
      %p119 = por %p117, %p118
      %p120 = scmp.ne.s32.totalorder %s109, %s110
      %p121 = scmp.eq.s32.totalorder %s17, 0
      %p122 = por %p120, %p121
      %p123 = scmp.ne.s32.totalorder %s109, %s110
      %p124 = scmp.eq.s32.totalorder %s18, 1
      %p125 = por %p123, %p124
      %p127 = scmp.ne.s32.totalorder %s110, %s126
      %p128 = scmp.eq.s32.totalorder %s18, 0
      %p129 = por %p127, %p128
      %p130 = scmp.le.s32.totalorder 1, %s12
      %p131 = scmp.lt.s32.totalorder %s12, 3
      %p132 = pnand %p130, %p131
      %p133 = pneg %p132
      // Predicated region
      $region9: #{pointnet_fp_forward.5} parent=5 // pred_check
        _
      $region10: #{pointnet_fp_forward.5} parent=5 // pred_check_branch
        %135 = sbr.rel (%p132) target = $region12
      $region11: #{pointnet_fp_forward.5} parent=5 // pred_region
        %s136 = ssub.s32 %s12, 1
        // Predicated region
        $region13: #{pointnet_fp_forward.5} parent=11 // pred_check
          %p137 = pneg %p73
        $region14: #{pointnet_fp_forward.5} parent=11 // pred_check_branch
          %139 = sbr.rel (%p137) target = $region16
        $region15: #{pointnet_fp_forward.5} parent=11 // pred_region
          _
        $region16: #{pointnet_fp_forward.5} parent=11 // pred_fallthru
          _
        // Predicated region
        $region17: #{pointnet_fp_forward.5} parent=11 // pred_check
          %p140 = pneg %p94
        $region18: #{pointnet_fp_forward.5} parent=11 // pred_check_branch
          %142 = sbr.rel (%p140) target = $region20
        $region19: #{pointnet_fp_forward.5} parent=11 // pred_region
          _
        $region20: #{pointnet_fp_forward.5} parent=11 // pred_fallthru
          _
      $region12: #{pointnet_fp_forward.5} parent=5 // pred_fallthru
        _
      %p143 = scmp.lt.s32.totalorder %s12, 2
      // Predicated region
      $region21: #{pointnet_fp_forward.5} parent=5 // pred_check
        %p144 = pneg %p143
      $region22: #{pointnet_fp_forward.5} parent=5 // pred_check_branch
        %146 = sbr.rel (%p144) target = $region24
      $region23: #{pointnet_fp_forward.5} parent=5 // pred_region
        // Predicated region
        $region25: #{pointnet_fp_forward.5} parent=23 // pred_check
          %p147 = pneg %p46
        $region26: #{pointnet_fp_forward.5} parent=23 // pred_check_branch
          %149 = sbr.rel (%p147) target = $region28
        $region27: #{pointnet_fp_forward.5} parent=23 // pred_region
          %p150 = scmp.lt.s32.totalorder %s19, 1
          %s151 = scalar_select %p150, %s19, 1
          %p152 = scmp.lt.s32.totalorder %s20, 0
          %s153 = scalar_select %p152, %s20, 0
          %s154 = smul.addr %s151, 2
          %s155 = sadd.s32 %s153, %s154
          %s156 = smul.addr %s155, 8
          %s157 = scalar_lea.vmem %s0, %s156
        $region28: #{pointnet_fp_forward.5} parent=23 // pred_fallthru
          _
      $region24: #{pointnet_fp_forward.5} parent=5 // pred_fallthru
        _
      %p158 = scmp.le.s32.totalorder 1, %s12
      %p159 = scmp.lt.s32.totalorder %s12, 3
      %p160 = pnand %p158, %p159
      %p161 = pneg %p160
      // Predicated region
      $region29: #{pointnet_fp_forward.5} parent=5 // pred_check
        _
      $region30: #{pointnet_fp_forward.5} parent=5 // pred_check_branch
        %163 = sbr.rel (%p160) target = $region32
      $region31: #{pointnet_fp_forward.5} parent=5 // pred_region
        %s164 = ssub.s32 %s12, 1
        %p165 = scmp.lt.s32.totalorder %s21, 1
        %s166 = scalar_select %p165, %s21, 1
        %p167 = scmp.lt.s32.totalorder %s22, 0
        %s168 = scalar_select %p167, %s22, 0
        %s169 = smul.addr %s166, 2
        %s170 = sadd.s32 %s168, %s169
        %s171 = smul.addr %s170, 8
        %s172 = scalar_lea.vmem %s0, %s171
        %p173 = pneg %p52
        %p174 = pneg %p49
        %p175 = pneg %p73
        %p176 = pneg %p70
        %p177 = pneg %p94
        %p178 = pneg %p91
        %p179 = pneg %p122
        %p180 = pneg %p119
        %s181 = sand.u32 %s109, 1
        %s182 = scalar_lea.sflag [#allocation3], %s181
        %s183 = sand.u32 %s109, 1
        %s184 = smul.addr %s183, 16
        %s185 = scalar_lea.vmem [#allocation2], %s184
        %p186 = scmp.lt.s32.totalorder %s21, 1
        %s187 = scalar_select %p186, %s21, 1
        %p188 = scmp.lt.s32.totalorder %s22, 0
        %s189 = scalar_select %p188, %s22, 0
        %s190 = smul.addr %s187, 2
        %s191 = sadd.s32 %s189, %s190
        %s192 = smul.addr %s191, 8
        %s193 = scalar_lea.vmem %s0, %s192
        %v194 = vld [vmem:[%s193] sm:$0xff]
        %v195 = vld [vmem:[%s193 + $0x8] sm:$0xff]
        %v196 = vld [vmem:[%s1] sm:$0xff]
        %v197 = vld [vmem:[%s1 + $0x8] sm:$0xff]
        %199 = vset.pattern.permute.xlu0 0
        %200 = vperm.xlu0 %199, %v196
        %v201 = vpop.permute.xlu0 %200
        %204 = vset.pattern.permute.xlu0 0
        %205 = vperm.xlu0 %204, %v197
        %v206 = vpop.permute.xlu0 %205
        %v208 = vmul.f32 %v194, %v201
        %v209 = vmul.f32 %v195, %v206
        %v210 = vld [vmem:[%s2] sm:$0xff]
        %v211 = vld [vmem:[%s2 + $0x8] sm:$0xff]
        %213 = vset.pattern.permute.xlu0 0
        %214 = vperm.xlu0 %213, %v210
        %v215 = vpop.permute.xlu0 %214
        %218 = vset.pattern.permute.xlu0 0
        %219 = vperm.xlu0 %218, %v211
        %v220 = vpop.permute.xlu0 %219
        %v222 = vadd.f32 %v208, %v215
        %v223 = vadd.f32 %v209, %v220
        %v224 = vmax.f32 %v222, 0.0
        %v225 = vmax.f32 %v223, 0.0
        %vm226 = vcmask 130048
        %227 = vst.msk [vmem:[%s185] sm:$0xff] %vm226, %v224
        %228 = vst.msk [vmem:[%s185 + $0x8] sm:$0xff] %vm226, %v225
        %s229 = sand.u32 %s109, 1
        %s230 = scalar_lea.sflag [#allocation3], %s229
        %s231 = sand.u32 %s109, 1
        %s232 = smul.addr %s231, 16
        %s233 = scalar_lea.vmem [#allocation2], %s232
        // Predicated region
        $region33: #{pointnet_fp_forward.5} parent=31 // pred_check
          %p234 = pneg %p119
        $region34: #{pointnet_fp_forward.5} parent=31 // pred_check_branch
          %236 = sbr.rel (%p234) target = $region36
        $region35: #{pointnet_fp_forward.5} parent=31 // pred_region
          %238 = vsyncadd %s230, 0
          %s239 = smul.addr %s21, 2
          %s240 = sadd.s32 %s22, %s239
          %s241 = smul.addr %s240, 8
          %s242 = scalar_lea.hbm %s3, %s241
          %s243 = sshll.u32 %s233, 4
          %s244 = int_to_ptr.vmem [resolvable:$true] %s243
          %s245 = sshll.u32 %s242, 4
          %s246 = int_to_ptr.hbm [resolvable:$true] %s245
          %251 = dma.vmem_to_hbm [thread:$0]  %s244, 256, %s246, %s230, 128, 128, 8
        $region36: #{pointnet_fp_forward.5} parent=31 // pred_fallthru
          _
      $region32: #{pointnet_fp_forward.5} parent=5 // pred_fallthru
        _
      %p252 = scmp.le.s32.totalorder 2, %s12
      // Predicated region
      $region37: #{pointnet_fp_forward.5} parent=5 // pred_check
        %p253 = pneg %p252
      $region38: #{pointnet_fp_forward.5} parent=5 // pred_check_branch
        %255 = sbr.rel (%p253) target = $region40
      $region39: #{pointnet_fp_forward.5} parent=5 // pred_region
        %s256 = ssub.s32 %s12, 2
        // Predicated region
        $region41: #{pointnet_fp_forward.5} parent=39 // pred_check
          %p257 = pneg %p125
        $region42: #{pointnet_fp_forward.5} parent=39 // pred_check_branch
          %259 = sbr.rel (%p257) target = $region44
        $region43: #{pointnet_fp_forward.5} parent=39 // pred_region
          %s260 = sand.u32 %s110, 1
          %s261 = scalar_lea.sflag [#allocation3], %s260
          %s262 = sand.u32 %s110, 1
          %s263 = smul.addr %s262, 16
          %s264 = scalar_lea.vmem [#allocation2], %s263
          %266 = dma.done %s261, 256
        $region44: #{pointnet_fp_forward.5} parent=39 // pred_fallthru
          _
      $region40: #{pointnet_fp_forward.5} parent=5 // pred_fallthru
        _
    $region6: #{pointnet_fp_forward.5} parent=1 // loop_footer
      %s16 = sadd.s32 1, %s12
    $region7: #{pointnet_fp_forward.5} parent=1 // loop_footer_branch
      %11 = sbr.rel target = $region3
    $region8: #{pointnet_fp_forward.5} parent=1 // loop_exit
      _
    %267 = vsyncpa [#allocation3], 1
    %s268 = scalar_lea.sflag [#allocation3], 1
    %269 = vsyncpa %s268, 1

// kernel: pointnet_fp_forward.3
$region0: #{pointnet_fp_forward.3}
  #allocation0 [shape = 'u32[]', space=smem, size = 0x4, offset = 0x4, fixed_abs, tag = 'smem constant byte address 0x4 - core index']
  #allocation1 [shape = 'u32[72,128]{1,0:T(1,128)}', space=vmem, size = 0x9000, scoped, tag = 'internal scratch']
  #allocation2 [shape = 'f32[1]{0:T(128)S(6)}', space=smem, size = 0x200, scoped, tag = 'scoped memory for pointnet_fp_forward.3']
  %s0 = inlined_call_operand.<no memory space> [shape: f32[1], index: 0, kind: input, shape index: {}]
  %s1 = inlined_call_operand.vmem [shape: f32[2,3,16], index: 1, kind: input, shape index: {}]
  %s2 = inlined_call_operand.vmem [shape: f32[2,8,3], index: 2, kind: input, shape index: {}]
  %s3 = inlined_call_operand.vmem [shape: f32[2,6,16], index: 3, kind: input, shape index: {}]
  %s4 = inlined_call_operand.vmem [shape: f32[2,32,8], index: 4, kind: input, shape index: {}]
  %s5 = inlined_call_operand.vmem [shape: f32[32,6], index: 5, kind: input, shape index: {}]
  %s6 = inlined_call_operand.vmem [shape: f32[2,32,16], index: 6, kind: output, shape index: {0}]
  %s7 = inlined_call_operand.vmem [shape: f32[2,1,64,1], index: 7, kind: output, shape index: {1}]
  %8 = xla_tuple %s6, %s7
  %s9 = sld [smem:[#allocation0]]
  $region65: #{pointnet_fp_forward.3} parent=0
    _
  %s11 = ssub.s32 1, %s9
  %s12 = scalar_select 0, %s11, %s9
  %13 = sst [smem:[#allocation2]] %s0
  loop: start=0, step=1, limit=4
  $region2: #{pointnet_fp_forward.3} parent=0 // loop_pre_header
    _
  $region3: #{pointnet_fp_forward.3} parent=0 // loop_header
    %s15 = sphi 0, %s19
    %p16 = scmp.ge.s32.totalorder %s15, 4
    %s22 = sphi 0, %s34
    %s23 = sphi 0, %s30
    %s24 = sphi 0, %s22
    %s25 = sphi 0, %s23
    %s26 = sphi 0, %s24
    %s27 = sphi 0, %s25
    %s35 = sphi 0, %s35
    %s37 = sphi 0, %s35
    %s38 = sphi 0, %s37
    %s52 = sphi 0, %s38
    %s60 = sphi 0, %s62
    %s63 = sphi 0, %s60
    %s64 = sphi 0, %s63
    %s80 = sphi 0, %s64
    %s86 = sphi 0, %s88
    %s89 = sphi 0, %s86
    %s90 = sphi 0, %s89
    %s106 = sphi 0, %s90
    %s114 = sphi 0, %s116
    %s117 = sphi 0, %s114
    %s118 = sphi 0, %s117
    %s134 = sphi 0, %s118
    %s140 = sphi 0, %s142
    %s143 = sphi 0, %s140
    %s144 = sphi 0, %s143
    %s160 = sphi 0, %s144
    %s164 = sphi 0, %s164
    %s166 = sphi 0, %s164
    %s167 = sphi 0, %s166
    %s181 = sphi 0, %s167
    %s189 = sphi 0, %s191
    %s192 = sphi 0, %s189
    %s193 = sphi 0, %s192
    %s209 = sphi 0, %s193
    %s217 = sphi 0, %s219
    %s220 = sphi 0, %s217
    %s221 = sphi 0, %s220
    %s237 = sphi 0, %s221
  $region4: #{pointnet_fp_forward.3} parent=0 // loop_header_branch
    %18 = sbr.rel (%p16) target = $region8
  $region5: #{pointnet_fp_forward.3} parent=0 // loop_body
    %s20 = ssub.s32 %s15, 1
    %s21 = ssub.s32 %s15, 2
    %s28 = sadd.s32 1, %s23
    %p29 = scmp.ge.s32.totalorder %s28, 1
    %s30 = scalar_select %p29, 0, %s28
    %s31 = sadd.s32 1, %s22
    %s32 = scalar_select %p29, %s31, %s22
    %p33 = scmp.ge.s32.totalorder %s32, 2
    %s34 = scalar_select %p33, 0, %s32
    %s36 = sadd.s32 %s35, 1
    %p39 = scmp.eq.s32.totalorder %s15, 1
    %p40 = scmp.ne.s32.totalorder %s35, %s37
    %p41 = scmp.eq.s32.totalorder %s15, 0
    %p42 = por %p40, %p41
    %p43 = scmp.ne.s32.totalorder %s35, %s37
    %p44 = scmp.eq.s32.totalorder %s20, 1
    %p45 = por %p43, %p44
    %p46 = scmp.ne.s32.totalorder %s37, %s38
    %p47 = scmp.eq.s32.totalorder %s20, 0
    %p48 = por %p46, %p47
    %p49 = scmp.ne.s32.totalorder %s37, %s38
    %p50 = scmp.eq.s32.totalorder %s21, 1
    %p51 = por %p49, %p50
    %p53 = scmp.ne.s32.totalorder %s38, %s52
    %p54 = scmp.eq.s32.totalorder %s21, 0
    %p55 = por %p53, %p54
    %s56 = ssub.s32 %s22, %s34
    %s57 = ssub.s32 %s23, %s30
    %s58 = sor.u32 %s56, %s57
    %p59 = scmp.eq.s32.totalorder %s58, 0
    %s61 = sadd.s32 %s60, 1
    %s62 = scalar_select %p59, %s60, %s61
    %p65 = pneg %p59
    %p66 = scmp.eq.s32.totalorder %s15, 1
    %p67 = por %p65, %p66
    %p68 = scmp.ne.s32.totalorder %s60, %s63
    %p69 = scmp.eq.s32.totalorder %s15, 0
    %p70 = por %p68, %p69
    %p71 = scmp.ne.s32.totalorder %s60, %s63
    %p72 = scmp.eq.s32.totalorder %s20, 1
    %p73 = por %p71, %p72
    %p74 = scmp.ne.s32.totalorder %s63, %s64
    %p75 = scmp.eq.s32.totalorder %s20, 0
    %p76 = por %p74, %p75
    %p77 = scmp.ne.s32.totalorder %s63, %s64
    %p78 = scmp.eq.s32.totalorder %s21, 1
    %p79 = por %p77, %p78
    %p81 = scmp.ne.s32.totalorder %s64, %s80
    %p82 = scmp.eq.s32.totalorder %s21, 0
    %p83 = por %p81, %p82
    %s84 = ssub.s32 %s22, %s34
    %p85 = scmp.eq.s32.totalorder %s84, 0
    %s87 = sadd.s32 %s86, 1
    %s88 = scalar_select %p85, %s86, %s87
    %p91 = pneg %p85
    %p92 = scmp.eq.s32.totalorder %s15, 1
    %p93 = por %p91, %p92
    %p94 = scmp.ne.s32.totalorder %s86, %s89
    %p95 = scmp.eq.s32.totalorder %s15, 0
    %p96 = por %p94, %p95
    %p97 = scmp.ne.s32.totalorder %s86, %s89
    %p98 = scmp.eq.s32.totalorder %s20, 1
    %p99 = por %p97, %p98
    %p100 = scmp.ne.s32.totalorder %s89, %s90
    %p101 = scmp.eq.s32.totalorder %s20, 0
    %p102 = por %p100, %p101
    %p103 = scmp.ne.s32.totalorder %s89, %s90
    %p104 = scmp.eq.s32.totalorder %s21, 1
    %p105 = por %p103, %p104
    %p107 = scmp.ne.s32.totalorder %s90, %s106
    %p108 = scmp.eq.s32.totalorder %s21, 0
    %p109 = por %p107, %p108
    %s110 = ssub.s32 %s22, %s34
    %s111 = ssub.s32 %s23, %s30
    %s112 = sor.u32 %s110, %s111
    %p113 = scmp.eq.s32.totalorder %s112, 0
    %s115 = sadd.s32 %s114, 1
    %s116 = scalar_select %p113, %s114, %s115
    %p119 = pneg %p113
    %p120 = scmp.eq.s32.totalorder %s15, 1
    %p121 = por %p119, %p120
    %p122 = scmp.ne.s32.totalorder %s114, %s117
    %p123 = scmp.eq.s32.totalorder %s15, 0
    %p124 = por %p122, %p123
    %p125 = scmp.ne.s32.totalorder %s114, %s117
    %p126 = scmp.eq.s32.totalorder %s20, 1
    %p127 = por %p125, %p126
    %p128 = scmp.ne.s32.totalorder %s117, %s118
    %p129 = scmp.eq.s32.totalorder %s20, 0
    %p130 = por %p128, %p129
    %p131 = scmp.ne.s32.totalorder %s117, %s118
    %p132 = scmp.eq.s32.totalorder %s21, 1
    %p133 = por %p131, %p132
    %p135 = scmp.ne.s32.totalorder %s118, %s134
    %p136 = scmp.eq.s32.totalorder %s21, 0
    %p137 = por %p135, %p136
    %s138 = ssub.s32 %s22, %s34
    %p139 = scmp.eq.s32.totalorder %s138, 0
    %s141 = sadd.s32 %s140, 1
    %s142 = scalar_select %p139, %s140, %s141
    %p145 = pneg %p139
    %p146 = scmp.eq.s32.totalorder %s15, 1
    %p147 = por %p145, %p146
    %p148 = scmp.ne.s32.totalorder %s140, %s143
    %p149 = scmp.eq.s32.totalorder %s15, 0
    %p150 = por %p148, %p149
    %p151 = scmp.ne.s32.totalorder %s140, %s143
    %p152 = scmp.eq.s32.totalorder %s20, 1
    %p153 = por %p151, %p152
    %p154 = scmp.ne.s32.totalorder %s143, %s144
    %p155 = scmp.eq.s32.totalorder %s20, 0
    %p156 = por %p154, %p155
    %p157 = scmp.ne.s32.totalorder %s143, %s144
    %p158 = scmp.eq.s32.totalorder %s21, 1
    %p159 = por %p157, %p158
    %p161 = scmp.ne.s32.totalorder %s144, %s160
    %p162 = scmp.eq.s32.totalorder %s21, 0
    %p163 = por %p161, %p162
    %s165 = sadd.s32 %s164, 1
    %p168 = scmp.eq.s32.totalorder %s15, 1
    %p169 = scmp.ne.s32.totalorder %s164, %s166
    %p170 = scmp.eq.s32.totalorder %s15, 0
    %p171 = por %p169, %p170
    %p172 = scmp.ne.s32.totalorder %s164, %s166
    %p173 = scmp.eq.s32.totalorder %s20, 1
    %p174 = por %p172, %p173
    %p175 = scmp.ne.s32.totalorder %s166, %s167
    %p176 = scmp.eq.s32.totalorder %s20, 0
    %p177 = por %p175, %p176
    %p178 = scmp.ne.s32.totalorder %s166, %s167
    %p179 = scmp.eq.s32.totalorder %s21, 1
    %p180 = por %p178, %p179
    %p182 = scmp.ne.s32.totalorder %s167, %s181
    %p183 = scmp.eq.s32.totalorder %s21, 0
    %p184 = por %p182, %p183
    %s185 = ssub.s32 %s22, %s34
    %s186 = ssub.s32 %s23, %s30
    %s187 = sor.u32 %s185, %s186
    %p188 = scmp.eq.s32.totalorder %s187, 0
    %s190 = sadd.s32 %s189, 1
    %s191 = scalar_select %p188, %s189, %s190
    %p194 = pneg %p188
    %p195 = scmp.eq.s32.totalorder %s15, 1
    %p196 = por %p194, %p195
    %p197 = scmp.ne.s32.totalorder %s189, %s192
    %p198 = scmp.eq.s32.totalorder %s15, 0
    %p199 = por %p197, %p198
    %p200 = scmp.ne.s32.totalorder %s189, %s192
    %p201 = scmp.eq.s32.totalorder %s20, 1
    %p202 = por %p200, %p201
    %p203 = scmp.ne.s32.totalorder %s192, %s193
    %p204 = scmp.eq.s32.totalorder %s20, 0
    %p205 = por %p203, %p204
    %p206 = scmp.ne.s32.totalorder %s192, %s193
    %p207 = scmp.eq.s32.totalorder %s21, 1
    %p208 = por %p206, %p207
    %p210 = scmp.ne.s32.totalorder %s193, %s209
    %p211 = scmp.eq.s32.totalorder %s21, 0
    %p212 = por %p210, %p211
    %s213 = ssub.s32 %s22, %s34
    %s214 = ssub.s32 %s23, %s30
    %s215 = sor.u32 %s213, %s214
    %p216 = scmp.eq.s32.totalorder %s215, 0
    %s218 = sadd.s32 %s217, 1
    %s219 = scalar_select %p216, %s217, %s218
    %p222 = pneg %p216
    %p223 = scmp.eq.s32.totalorder %s15, 1
    %p224 = por %p222, %p223
    %p225 = scmp.ne.s32.totalorder %s217, %s220
    %p226 = scmp.eq.s32.totalorder %s15, 0
    %p227 = por %p225, %p226
    %p228 = scmp.ne.s32.totalorder %s217, %s220
    %p229 = scmp.eq.s32.totalorder %s20, 1
    %p230 = por %p228, %p229
    %p231 = scmp.ne.s32.totalorder %s220, %s221
    %p232 = scmp.eq.s32.totalorder %s20, 0
    %p233 = por %p231, %p232
    %p234 = scmp.ne.s32.totalorder %s220, %s221
    %p235 = scmp.eq.s32.totalorder %s21, 1
    %p236 = por %p234, %p235
    %p238 = scmp.ne.s32.totalorder %s221, %s237
    %p239 = scmp.eq.s32.totalorder %s21, 0
    %p240 = por %p238, %p239
    %p241 = scmp.le.s32.totalorder 1, %s15
    %p242 = scmp.lt.s32.totalorder %s15, 3
    %p243 = pnand %p241, %p242
    %p244 = pneg %p243
    // Predicated region
    $region9: #{pointnet_fp_forward.3} parent=5 // pred_check
      _
    $region10: #{pointnet_fp_forward.3} parent=5 // pred_check_branch
      %246 = sbr.rel (%p243) target = $region12
    $region11: #{pointnet_fp_forward.3} parent=5 // pred_region
      %s247 = ssub.s32 %s15, 1
      // Predicated region
      $region13: #{pointnet_fp_forward.3} parent=11 // pred_check
        %p248 = pneg %p48
      $region14: #{pointnet_fp_forward.3} parent=11 // pred_check_branch
        %250 = sbr.rel (%p248) target = $region16
      $region15: #{pointnet_fp_forward.3} parent=11 // pred_region
        _
      $region16: #{pointnet_fp_forward.3} parent=11 // pred_fallthru
        _
      // Predicated region
      $region17: #{pointnet_fp_forward.3} parent=11 // pred_check
        %p251 = pneg %p177
      $region18: #{pointnet_fp_forward.3} parent=11 // pred_check_branch
        %253 = sbr.rel (%p251) target = $region20
      $region19: #{pointnet_fp_forward.3} parent=11 // pred_region
        _
      $region20: #{pointnet_fp_forward.3} parent=11 // pred_fallthru
        _
    $region12: #{pointnet_fp_forward.3} parent=5 // pred_fallthru
      _
    %p254 = scmp.lt.s32.totalorder %s15, 2
    // Predicated region
    $region21: #{pointnet_fp_forward.3} parent=5 // pred_check
      %p255 = pneg %p254
    $region22: #{pointnet_fp_forward.3} parent=5 // pred_check_branch
      %257 = sbr.rel (%p255) target = $region24
    $region23: #{pointnet_fp_forward.3} parent=5 // pred_region
      // Predicated region
      $region25: #{pointnet_fp_forward.3} parent=23 // pred_check
        %p258 = pneg %p70
      $region26: #{pointnet_fp_forward.3} parent=23 // pred_check_branch
        %260 = sbr.rel (%p258) target = $region28
      $region27: #{pointnet_fp_forward.3} parent=23 // pred_region
        %p261 = scmp.lt.s32.totalorder %s22, 1
        %s262 = scalar_select %p261, %s22, 1
        %p263 = scmp.lt.s32.totalorder %s23, 0
        %s264 = scalar_select %p263, %s23, 0
        %s265 = sadd.s32 %s264, %s262
        %s266 = smul.addr %s265, 4
        %s267 = scalar_lea.vmem %s1, %s266
      $region28: #{pointnet_fp_forward.3} parent=23 // pred_fallthru
        _
      // Predicated region
      $region29: #{pointnet_fp_forward.3} parent=23 // pred_check
        %p268 = pneg %p96
      $region30: #{pointnet_fp_forward.3} parent=23 // pred_check_branch
        %270 = sbr.rel (%p268) target = $region32
      $region31: #{pointnet_fp_forward.3} parent=23 // pred_region
        %p271 = scmp.lt.s32.totalorder %s22, 1
        %s272 = scalar_select %p271, %s22, 1
        %s273 = smul.addr %s272, 8
        %s274 = scalar_lea.vmem %s2, %s273
      $region32: #{pointnet_fp_forward.3} parent=23 // pred_fallthru
        _
      // Predicated region
      $region33: #{pointnet_fp_forward.3} parent=23 // pred_check
        %p275 = pneg %p124
      $region34: #{pointnet_fp_forward.3} parent=23 // pred_check_branch
        %277 = sbr.rel (%p275) target = $region36
      $region35: #{pointnet_fp_forward.3} parent=23 // pred_region
        %p278 = scmp.lt.s32.totalorder %s22, 1
        %s279 = scalar_select %p278, %s22, 1
        %p280 = scmp.lt.s32.totalorder %s23, 0
        %s281 = scalar_select %p280, %s23, 0
        %s282 = sadd.s32 %s281, %s279
        %s283 = smul.addr %s282, 8
        %s284 = scalar_lea.vmem %s3, %s283
      $region36: #{pointnet_fp_forward.3} parent=23 // pred_fallthru
        _
      // Predicated region
      $region37: #{pointnet_fp_forward.3} parent=23 // pred_check
        %p285 = pneg %p150
      $region38: #{pointnet_fp_forward.3} parent=23 // pred_check_branch
        %287 = sbr.rel (%p285) target = $region40
      $region39: #{pointnet_fp_forward.3} parent=23 // pred_region
        %p288 = scmp.lt.s32.totalorder %s22, 1
        %s289 = scalar_select %p288, %s22, 1
        %s290 = smul.addr %s289, 4
        %s291 = smul.addr %s290, 8
        %s292 = scalar_lea.vmem %s4, %s291
      $region40: #{pointnet_fp_forward.3} parent=23 // pred_fallthru
        _
    $region24: #{pointnet_fp_forward.3} parent=5 // pred_fallthru
      _
    %p293 = scmp.le.s32.totalorder 1, %s15
    %p294 = scmp.lt.s32.totalorder %s15, 3
    %p295 = pnand %p293, %p294
    %p296 = pneg %p295
    // Predicated region
    $region41: #{pointnet_fp_forward.3} parent=5 // pred_check
      _
    $region42: #{pointnet_fp_forward.3} parent=5 // pred_check_branch
      %298 = sbr.rel (%p295) target = $region44
    $region43: #{pointnet_fp_forward.3} parent=5 // pred_region
      %s299 = ssub.s32 %s15, 1
      %p300 = pneg %p48
      %p301 = pneg %p45
      %p302 = scmp.lt.s32.totalorder %s24, 1
      %s303 = scalar_select %p302, %s24, 1
      %p304 = scmp.lt.s32.totalorder %s25, 0
      %s305 = scalar_select %p304, %s25, 0
      %s306 = sadd.s32 %s305, %s303
      %s307 = smul.addr %s306, 4
      %s308 = scalar_lea.vmem %s1, %s307
      %p309 = pneg %p76
      %p310 = pneg %p73
      %p311 = scmp.lt.s32.totalorder %s24, 1
      %s312 = scalar_select %p311, %s24, 1
      %s313 = smul.addr %s312, 8
      %s314 = scalar_lea.vmem %s2, %s313
      %p315 = pneg %p102
      %p316 = pneg %p99
      %p317 = scmp.lt.s32.totalorder %s24, 1
      %s318 = scalar_select %p317, %s24, 1
      %p319 = scmp.lt.s32.totalorder %s25, 0
      %s320 = scalar_select %p319, %s25, 0
      %s321 = sadd.s32 %s320, %s318
      %s322 = smul.addr %s321, 8
      %s323 = scalar_lea.vmem %s3, %s322
      %p324 = pneg %p130
      %p325 = pneg %p127
      %p326 = scmp.lt.s32.totalorder %s24, 1
      %s327 = scalar_select %p326, %s24, 1
      %s328 = smul.addr %s327, 4
      %s329 = smul.addr %s328, 8
      %s330 = scalar_lea.vmem %s4, %s329
      %p331 = pneg %p156
      %p332 = pneg %p153
      %p333 = pneg %p177
      %p334 = pneg %p174
      %p335 = pneg %p205
      %p336 = pneg %p202
      %p337 = scmp.lt.s32.totalorder %s24, 1
      %s338 = scalar_select %p337, %s24, 1
      %p339 = scmp.lt.s32.totalorder %s25, 0
      %s340 = scalar_select %p339, %s25, 0
      %s341 = smul.addr %s338, 4
      %s342 = sadd.s32 %s340, %s341
      %s343 = smul.addr %s342, 8
      %s344 = scalar_lea.vmem %s6, %s343
      %p345 = pneg %p233
      %p346 = pneg %p230
      %p347 = scmp.lt.s32.totalorder %s24, 1
      %s348 = scalar_select %p347, %s24, 1
      %p349 = scmp.lt.s32.totalorder %s25, 0
      %s350 = scalar_select %p349, %s25, 0
      %s351 = smul.addr %s350, 8
      %s352 = smul.addr %s348, 8
      %s353 = sadd.s32 %s351, %s352
      %s354 = smul.addr %s353, 8
      %s355 = scalar_lea.vmem %s7, %s354
      %p356 = scmp.lt.s32.totalorder %s24, 1
      %s357 = scalar_select %p356, %s24, 1
      %p358 = scmp.lt.s32.totalorder %s25, 0
      %s359 = scalar_select %p358, %s25, 0
      %s360 = sadd.s32 %s359, %s357
      %s361 = smul.addr %s360, 4
      %s362 = scalar_lea.vmem %s1, %s361
      %p363 = scmp.lt.s32.totalorder %s24, 1
      %s364 = scalar_select %p363, %s24, 1
      %s365 = smul.addr %s364, 8
      %s366 = scalar_lea.vmem %s2, %s365
      %p367 = scmp.lt.s32.totalorder %s24, 1
      %s368 = scalar_select %p367, %s24, 1
      %p369 = scmp.lt.s32.totalorder %s25, 0
      %s370 = scalar_select %p369, %s25, 0
      %s371 = sadd.s32 %s370, %s368
      %s372 = smul.addr %s371, 8
      %s373 = scalar_lea.vmem %s3, %s372
      %p374 = scmp.lt.s32.totalorder %s24, 1
      %s375 = scalar_select %p374, %s24, 1
      %s376 = smul.addr %s375, 4
      %s377 = smul.addr %s376, 8
      %s378 = scalar_lea.vmem %s4, %s377
      %p379 = scmp.lt.s32.totalorder %s24, 1
      %s380 = scalar_select %p379, %s24, 1
      %p381 = scmp.lt.s32.totalorder %s25, 0
      %s382 = scalar_select %p381, %s25, 0
      %s383 = smul.addr %s380, 4
      %s384 = sadd.s32 %s382, %s383
      %s385 = smul.addr %s384, 8
      %s386 = scalar_lea.vmem %s6, %s385
      %p387 = scmp.lt.s32.totalorder %s24, 1
      %s388 = scalar_select %p387, %s24, 1
      %p389 = scmp.lt.s32.totalorder %s25, 0
      %s390 = scalar_select %p389, %s25, 0
      %s391 = smul.addr %s390, 8
      %s392 = smul.addr %s388, 8
      %s393 = sadd.s32 %s391, %s392
      %s394 = smul.addr %s393, 8
      %s395 = scalar_lea.vmem %s7, %s394
      %s396 = sld [smem:[#allocation2]]
      %v397 = vstv %s396
      %v398 = vrcp.pop %v397
      %v399 = vmul.f32 %v397, %v398
      %v400 = vsub.f32 1.0, %v399
      %v401 = vmul.f32 %v398, %v400
      %v402 = vadd.f32 %v398, %v401
      %vm403 = vweird.f32 %v397
      %vm404 = vweird.f32 %v398
      %vm405 = vmor %vm403, %vm404
      %v406 = vsel %vm405, %v398, %v402
      %v407 = vand.u32 2147483647, %v397
      %vm408 = vcmp.eq.f32.partialorder %v407, 8.507059e+37
      %v409 = vand.u32 %v397, 2147483648
      %v410 = vor.u32 1.1754944e-38, %v409
      %v411 = vsel %vm408, %v410, %v406
      %s412 = vtos %v411
      %v413 = vld [vmem:[%s362] sm:$0x7]
      %v414 = vstv %s412
      %v415 = vmul.f32 %v413, %v414
      %v416 = vld [vmem:[%s366] sm:$0xff]
      %v417 = vmul.f32 %v416, %v414
      %vm418 = vcmask 23552
      %v420 = vsel %vm418, %v417, 0
      %vm422 = vcmask 1042432
      %v424 = vsel %vm422, %v415, 0
      %426 = vmatpush.msra.mxu0 0.0
      %427 = vmatpush.msra.mxu0 0.0
      %428 = vmatpush.msra.mxu0 0.0
      %429 = vmatpush.msra.mxu0 0.0
      %430 = vmatpush.msra.mxu0 0.0
      %431 = vmatpush.msra.mxu0 0.0
      %432 = vmatpush.msra.mxu0 0.0
      %433 = vmatpush.msra.mxu0 0.0
      %434 = vmatpush.msra.mxu0 0.0
      %435 = vmatpush.msra.mxu0 0.0
      %436 = vmatpush.msra.mxu0 0.0
      %437 = vmatpush.msra.mxu0 0.0
      %438 = vmatpush.msra.mxu0 0.0
      %439 = vmatpush.msra.mxu0 0.0
      %440 = vmatpush.msra.mxu0 0.0
      %441 = vmatpush.msra.mxu0 %v424
      %442 = vmatmul.f32.gmra.mxu0 %v420
      %v443 = vpop.f32.mrf.mxu0
      %v444 = vadd.f32 0.0, %v443
      %445 = vdwg.mxu0
      %v446 = vmul.f32 %v415, %v415
      %vm447 = vcmask 124928
      %v448 = vsel %vm447, %v446, 0.0
      %v449 = vrot.slane %v448, 4
      %v450 = vadd.f32 %v448, %v449
      %v451 = vrot.slane %v450, 2
      %v452 = vadd.f32 %v450, %v451
      %v453 = vrot.slane %v452, 1
      %v454 = vadd.f32 %v452, %v453
      %v455 = vmul.f32 %v417, %v417
      %v456 = vsel %vm418, %v455, 0.0
      %457 = vadd.xlane.f32.xlu0 %v456
      %v458 = vpop.xlane.xlu0 %457
      %v459 = vmul.f32 %v444, 2.0
      %v460 = vsub.f32 %v458, %v459
      %v461 = vadd.f32 %v460, %v454
      %v462 = vstv %s396
      %v463 = vmul.f32 %v461, %v462
      %v464 = vlaneseq
      %v465 = vshrl.u32 %v464, 7
      %vm466 = vcmask 130048
      %v467 = vsel %vm466, %v463, inf
      %v468 = vrot.slane %v467, 4
      %v469 = vmin.f32 %v467, %v468
      %v470 = vrot.slane %v469, 2
      %v471 = vmin.f32 %v469, %v470
      %v472 = vrot.slane %v471, 1
      %v473 = vmin.f32 %v471, %v472
      %vm474 = vcmp.eq.f32.partialorder %v463, %v473
      %v475 = vsel %vm474, %v465, 8
      %v476 = vsel %vm466, %v475, 2147483647
      %v477 = vrot.slane %v476, 4
      %vm478 = vcmp.lt.s32.totalorder %v476, %v477
      %v479 = vsel %vm478, %v476, %v477
      %v480 = vrot.slane %v479, 2
      %vm481 = vcmp.lt.s32.totalorder %v479, %v480
      %v482 = vsel %vm481, %v479, %v480
      %v483 = vrot.slane %v482, 1
      %vm484 = vcmp.lt.s32.totalorder %v482, %v483
      %v485 = vsel %vm484, %v482, %v483
      %vm486 = vcmp.eq.s32.totalorder %v465, %v485
      %v487 = vadd.f32 %v473, 1e-08
      %v488 = vrcp.pop %v487
      %v489 = vsel %vm486, %v488, 0.0
      %v490 = vadd.f32 %v489, 0.0
      %v491 = vadd.f32 %v488, 0.0
      %v492 = vsel %vm486, 1e+30, %v463
      %v493 = vsel %vm466, %v492, inf
      %v494 = vrot.slane %v493, 4
      %v495 = vmin.f32 %v493, %v494
      %v496 = vrot.slane %v495, 2
      %v497 = vmin.f32 %v495, %v496
      %v498 = vrot.slane %v497, 1
      %v499 = vmin.f32 %v497, %v498
      %vm500 = vcmp.eq.f32.partialorder %v492, %v499
      %v501 = vsel %vm500, %v465, 8
      %v502 = vsel %vm466, %v501, 2147483647
      %v503 = vrot.slane %v502, 4
      %vm504 = vcmp.lt.s32.totalorder %v502, %v503
      %v505 = vsel %vm504, %v502, %v503
      %v506 = vrot.slane %v505, 2
      %vm507 = vcmp.lt.s32.totalorder %v505, %v506
      %v508 = vsel %vm507, %v505, %v506
      %v509 = vrot.slane %v508, 1
      %vm510 = vcmp.lt.s32.totalorder %v508, %v509
      %v511 = vsel %vm510, %v508, %v509
      %vm512 = vcmp.eq.s32.totalorder %v465, %v511
      %v513 = vadd.f32 %v499, 1e-08
      %v514 = vrcp.pop %v513
      %v515 = vsel %vm512, %v514, 0.0
      %v516 = vadd.f32 %v490, %v515
      %v517 = vadd.f32 %v491, %v514
      %v518 = vsel %vm512, 1e+30, %v492
      %v519 = vsel %vm466, %v518, inf
      %v520 = vrot.slane %v519, 4
      %v521 = vmin.f32 %v519, %v520
      %v522 = vrot.slane %v521, 2
      %v523 = vmin.f32 %v521, %v522
      %v524 = vrot.slane %v523, 1
      %v525 = vmin.f32 %v523, %v524
      %vm526 = vcmp.eq.f32.partialorder %v518, %v525
      %v527 = vsel %vm526, %v465, 8
      %v528 = vsel %vm466, %v527, 2147483647
      %v529 = vrot.slane %v528, 4
      %vm530 = vcmp.lt.s32.totalorder %v528, %v529
      %v531 = vsel %vm530, %v528, %v529
      %v532 = vrot.slane %v531, 2
      %vm533 = vcmp.lt.s32.totalorder %v531, %v532
      %v534 = vsel %vm533, %v531, %v532
      %v535 = vrot.slane %v534, 1
      %vm536 = vcmp.lt.s32.totalorder %v534, %v535
      %v537 = vsel %vm536, %v534, %v535
      %vm538 = vcmp.eq.s32.totalorder %v465, %v537
      %v539 = vadd.f32 %v525, 1e-08
      %v540 = vrcp.pop %v539
      %v541 = vsel %vm538, %v540, 0.0
      %v542 = vadd.f32 %v516, %v541
      %v543 = vadd.f32 %v517, %v540
      %v544 = vrcp.pop %v543
      %v545 = vld [vmem:[%s378] sm:$0xff]
      %v546 = vld [vmem:[%s378 + $0x8] sm:$0xff]
      %v547 = vld [vmem:[%s378 + $0x10] sm:$0xff]
      %v548 = vld [vmem:[%s378 + $0x18] sm:$0xff]
      %vm549 = vcmask 64512
      %v551 = vsel %vm549, %v545, 0
      %v554 = vsel %vm549, %v546, 0
      %v557 = vsel %vm549, %v547, 0
      %v560 = vsel %vm549, %v548, 0
      %562 = vmatpush.msra.mxu0 0.0
      %563 = vmatpush.msra.mxu0 0.0
      %564 = vmatpush.msra.mxu0 0.0
      %565 = vmatpush.msra.mxu0 0.0
      %566 = vmatpush.msra.mxu0 0.0
      %567 = vmatpush.msra.mxu0 0.0
      %568 = vmatpush.msra.mxu0 0.0
      %569 = vmatpush.msra.mxu0 0.0
      %570 = vmatpush.msra.mxu0 0.0
      %571 = vmatpush.msra.mxu0 0.0
      %572 = vmatpush.msra.mxu0 0.0
      %573 = vmatpush.msra.mxu0 0.0
      %574 = vmatpush.msra.mxu0 0.0
      %575 = vmatpush.msra.mxu0 0.0
      %576 = vmatpush.msra.mxu0 0.0
      %577 = vmatpush.msra.mxu0 %v542
      %578 = vmatmul.f32.gmra.mxu0 %v551
      %v579 = vpop.f32.mrf.mxu0
      %v580 = vadd.f32 0.0, %v579
      %581 = vmatmul.f32.gmra.mxu0 %v554
      %v582 = vpop.f32.mrf.mxu0
      %v583 = vadd.f32 0.0, %v582
      %584 = vmatmul.f32.gmra.mxu0 %v557
      %v585 = vpop.f32.mrf.mxu0
      %v586 = vadd.f32 0.0, %v585
      %587 = vmatmul.f32.gmra.mxu0 %v560
      %v588 = vpop.f32.mrf.mxu0
      %v589 = vadd.f32 0.0, %v588
      %590 = vdwg.mxu0
      %v591 = vmul.f32 %v580, %v544
      %v592 = vmul.f32 %v583, %v544
      %v593 = vmul.f32 %v586, %v544
      %v594 = vmul.f32 %v589, %v544
      %v595 = vld [vmem:[%s5] sm:$0xff]
      %v596 = vld [vmem:[%s5 + $0x8] sm:$0xff]
      %v597 = vld [vmem:[%s5 + $0x10] sm:$0xff]
      %v598 = vld [vmem:[%s5 + $0x18] sm:$0xff]
      %v599 = vld [vmem:[%s373] sm:$0x3f]
      %vm600 = vcmask 48128
      %v602 = vsel %vm600, %v595, 0
      %v605 = vsel %vm600, %v596, 0
      %v608 = vsel %vm600, %v597, 0
      %v611 = vsel %vm600, %v598, 0
      %vm613 = vcmask 1045504
      %v615 = vsel %vm613, %v599, 0
      %617 = vmatpush.msra.mxu0 0.0
      %618 = vmatpush.msra.mxu0 0.0
      %619 = vmatpush.msra.mxu0 0.0
      %620 = vmatpush.msra.mxu0 0.0
      %621 = vmatpush.msra.mxu0 0.0
      %622 = vmatpush.msra.mxu0 0.0
      %623 = vmatpush.msra.mxu0 0.0
      %624 = vmatpush.msra.mxu0 0.0
      %625 = vmatpush.msra.mxu0 0.0
      %626 = vmatpush.msra.mxu0 0.0
      %627 = vmatpush.msra.mxu0 0.0
      %628 = vmatpush.msra.mxu0 0.0
      %629 = vmatpush.msra.mxu0 0.0
      %630 = vmatpush.msra.mxu0 0.0
      %631 = vmatpush.msra.mxu0 0.0
      %632 = vmatpush.msra.mxu0 %v615
      %633 = vmatmul.f32.gmra.mxu0 %v602
      %v634 = vpop.f32.mrf.mxu0
      %v635 = vadd.f32 0.0, %v634
      %636 = vmatmul.f32.gmra.mxu0 %v605
      %v637 = vpop.f32.mrf.mxu0
      %v638 = vadd.f32 0.0, %v637
      %639 = vmatmul.f32.gmra.mxu0 %v608
      %v640 = vpop.f32.mrf.mxu0
      %v641 = vadd.f32 0.0, %v640
      %642 = vmatmul.f32.gmra.mxu0 %v611
      %v643 = vpop.f32.mrf.mxu0
      %v644 = vadd.f32 0.0, %v643
      %645 = vdwg.mxu0
      %v646 = vadd.f32 %v591, %v635
      %v647 = vadd.f32 %v592, %v638
      %v648 = vadd.f32 %v593, %v641
      %v649 = vadd.f32 %v594, %v644
      %650 = vst.msk [vmem:[%s386] sm:$0xff] %vm466, %v646
      %651 = vst.msk [vmem:[%s386 + $0x8] sm:$0xff] %vm466, %v647
      %652 = vst.msk [vmem:[%s386 + $0x10] sm:$0xff] %vm466, %v648
      %653 = vst.msk [vmem:[%s386 + $0x18] sm:$0xff] %vm466, %v649
      %v654 = vmul.f32 %v646, %v646
      %v655 = vmul.f32 %v647, %v647
      %v656 = vmul.f32 %v648, %v648
      %v657 = vmul.f32 %v649, %v649
      %v658 = vsel %vm466, %v646, 0.0
      %659 = vadd.xlane.f32.xlu0 %v658
      %v660 = vpop.xlane.xlu0 %659
      %v661 = vsel %vm466, %v647, 0.0
      %662 = vadd.xlane.f32.xlu0 %v661
      %v663 = vpop.xlane.xlu0 %662
      %v664 = vsel %vm466, %v648, 0.0
      %665 = vadd.xlane.f32.xlu0 %v664
      %v666 = vpop.xlane.xlu0 %665
      %v667 = vsel %vm466, %v649, 0.0
      %668 = vadd.xlane.f32.xlu0 %v667
      %v669 = vpop.xlane.xlu0 %668
      %v670 = vsel %vm466, %v654, 0.0
      %671 = vadd.xlane.f32.xlu0 %v670
      %v672 = vpop.xlane.xlu0 %671
      %v673 = vsel %vm466, %v655, 0.0
      %674 = vadd.xlane.f32.xlu0 %v673
      %v675 = vpop.xlane.xlu0 %674
      %v676 = vsel %vm466, %v656, 0.0
      %677 = vadd.xlane.f32.xlu0 %v676
      %v678 = vpop.xlane.xlu0 %677
      %v679 = vsel %vm466, %v657, 0.0
      %680 = vadd.xlane.f32.xlu0 %v679
      %v681 = vpop.xlane.xlu0 %680
      %vm682 = vcmask 7168
      %683 = vst.msk [vmem:[%s395] sm:$0xff] %vm682, %v660
      %684 = vst.msk [vmem:[%s395 + $0x8] sm:$0xff] %vm682, %v663
      %685 = vst.msk [vmem:[%s395 + $0x10] sm:$0xff] %vm682, %v666
      %686 = vst.msk [vmem:[%s395 + $0x18] sm:$0xff] %vm682, %v669
      %687 = vst.msk [vmem:[%s395 + $0x20] sm:$0xff] %vm682, %v672
      %688 = vst.msk [vmem:[%s395 + $0x28] sm:$0xff] %vm682, %v675
      %689 = vst.msk [vmem:[%s395 + $0x30] sm:$0xff] %vm682, %v678
      %690 = vst.msk [vmem:[%s395 + $0x38] sm:$0xff] %vm682, %v681
      %p691 = scmp.lt.s32.totalorder %s24, 1
      %s692 = scalar_select %p691, %s24, 1
      %p693 = scmp.lt.s32.totalorder %s25, 0
      %s694 = scalar_select %p693, %s25, 0
      %s695 = smul.addr %s692, 4
      %s696 = sadd.s32 %s694, %s695
      %s697 = smul.addr %s696, 8
      %s698 = scalar_lea.vmem %s6, %s697
      %p699 = scmp.lt.s32.totalorder %s24, 1
      %s700 = scalar_select %p699, %s24, 1
      %p701 = scmp.lt.s32.totalorder %s25, 0
      %s702 = scalar_select %p701, %s25, 0
      %s703 = smul.addr %s702, 8
      %s704 = smul.addr %s700, 8
      %s705 = sadd.s32 %s703, %s704
      %s706 = smul.addr %s705, 8
      %s707 = scalar_lea.vmem %s7, %s706
      // Predicated region
      $region45: #{pointnet_fp_forward.3} parent=43 // pred_check
        %p708 = pneg %p202
      $region46: #{pointnet_fp_forward.3} parent=43 // pred_check_branch
        %710 = sbr.rel (%p708) target = $region48
      $region47: #{pointnet_fp_forward.3} parent=43 // pred_region
        _
      $region48: #{pointnet_fp_forward.3} parent=43 // pred_fallthru
        _
      // Predicated region
      $region49: #{pointnet_fp_forward.3} parent=43 // pred_check
        %p711 = pneg %p230
      $region50: #{pointnet_fp_forward.3} parent=43 // pred_check_branch
        %713 = sbr.rel (%p711) target = $region52
      $region51: #{pointnet_fp_forward.3} parent=43 // pred_region
        _
      $region52: #{pointnet_fp_forward.3} parent=43 // pred_fallthru
        _
    $region44: #{pointnet_fp_forward.3} parent=5 // pred_fallthru
      _
    %p714 = scmp.le.s32.totalorder 2, %s15
    // Predicated region
    $region53: #{pointnet_fp_forward.3} parent=5 // pred_check
      %p715 = pneg %p714
    $region54: #{pointnet_fp_forward.3} parent=5 // pred_check_branch
      %717 = sbr.rel (%p715) target = $region56
    $region55: #{pointnet_fp_forward.3} parent=5 // pred_region
      %s718 = ssub.s32 %s15, 2
      // Predicated region
      $region57: #{pointnet_fp_forward.3} parent=55 // pred_check
        %p719 = pneg %p208
      $region58: #{pointnet_fp_forward.3} parent=55 // pred_check_branch
        %721 = sbr.rel (%p719) target = $region60
      $region59: #{pointnet_fp_forward.3} parent=55 // pred_region
        %p722 = scmp.lt.s32.totalorder %s26, 1
        %s723 = scalar_select %p722, %s26, 1
        %p724 = scmp.lt.s32.totalorder %s27, 0
        %s725 = scalar_select %p724, %s27, 0
        %s726 = smul.addr %s723, 4
        %s727 = sadd.s32 %s725, %s726
        %s728 = smul.addr %s727, 8
        %s729 = scalar_lea.vmem %s6, %s728
      $region60: #{pointnet_fp_forward.3} parent=55 // pred_fallthru
        _
      // Predicated region
      $region61: #{pointnet_fp_forward.3} parent=55 // pred_check
        %p730 = pneg %p236
      $region62: #{pointnet_fp_forward.3} parent=55 // pred_check_branch
        %732 = sbr.rel (%p730) target = $region64
      $region63: #{pointnet_fp_forward.3} parent=55 // pred_region
        %p733 = scmp.lt.s32.totalorder %s26, 1
        %s734 = scalar_select %p733, %s26, 1
        %p735 = scmp.lt.s32.totalorder %s27, 0
        %s736 = scalar_select %p735, %s27, 0
        %s737 = smul.addr %s736, 8
        %s738 = smul.addr %s734, 8
        %s739 = sadd.s32 %s737, %s738
        %s740 = smul.addr %s739, 8
        %s741 = scalar_lea.vmem %s7, %s740
      $region64: #{pointnet_fp_forward.3} parent=55 // pred_fallthru
        _
    $region56: #{pointnet_fp_forward.3} parent=5 // pred_fallthru
      _
  $region6: #{pointnet_fp_forward.3} parent=0 // loop_footer
    %s19 = sadd.s32 1, %s15
  $region7: #{pointnet_fp_forward.3} parent=0 // loop_footer_branch
    %14 = sbr.rel target = $region3
  $region8: #{pointnet_fp_forward.3} parent=0 // loop_exit
    _

</llo_original>
